<compile_context>
chip_gen: v5e
topology: v5e:2x2
jax: 0.10.0
libtpu: 0.0.40
codegen_flags: <defaults>
</compile_context>

<pallas_src>
import functools

import jax
import jax.numpy as jnp
from jax.experimental import pallas as pl
from jax.experimental.pallas import tpu as pltpu


def _bilstm_kernel(x_ref, wih_ref, whhf_ref, whhb_ref, b_ref,
                   out_ref, gates_ref, *, seq_len, batch):
    """Fused bidirectional single-layer LSTM.

    x_ref:     (T*B, E)      flattened input sequence
    wih_ref:   (E, 8H)       [W_ih_f^T | W_ih_b^T]
    whhf_ref:  (H, 4H)       W_hh_f^T
    whhb_ref:  (H, 4H)       W_hh_b^T
    b_ref:     (1, 8H)       [b_ih_f+b_hh_f | b_ih_b+b_hh_b]
    out_ref:   (T*B, 2H)     fwd hidden in [:, :H], bwd hidden in [:, H:]
    gates_ref: (T*B, 8H)     VMEM scratch for the hoisted input projection
    """
    H = whhf_ref.shape[0]
    H4 = 4 * H

    # 1) Input projection for BOTH directions in a single MXU GEMM, bias folded.
    gates_ref[...] = (
        jnp.dot(x_ref[...].astype(jnp.float32), wih_ref[...],
                preferred_element_type=jnp.float32)
        + b_ref[...])

    # Hoist the recurrent weights out of the time loop.
    whh_f = whhf_ref[...]
    whh_b = whhb_ref[...]

    def cell(gates, c_prev):
        # PyTorch gate ordering: input, forget, cell(g), output.
        i_g = jax.nn.sigmoid(gates[:, 0 * H:1 * H])
        f_g = jax.nn.sigmoid(gates[:, 1 * H:2 * H])
        g_g = jnp.tanh(gates[:, 2 * H:3 * H])
        o_g = jax.nn.sigmoid(gates[:, 3 * H:4 * H])
        c_new = f_g * c_prev + i_g * g_g
        h_new = o_g * jnp.tanh(c_new)
        return h_new, c_new

    def step(s, carry):
        hf, cf, hb, cb = carry
        rf = s * batch                       # forward-direction row offset
        rb = (seq_len - 1 - s) * batch       # backward-direction row offset

        gf = gates_ref[pl.ds(rf, batch), pl.ds(0, H4)] + jnp.dot(
            hf, whh_f, preferred_element_type=jnp.float32)
        gb = gates_ref[pl.ds(rb, batch), pl.ds(H4, H4)] + jnp.dot(
            hb, whh_b, preferred_element_type=jnp.float32)

        hf, cf = cell(gf, cf)
        hb, cb = cell(gb, cb)

        out_ref[pl.ds(rf, batch), pl.ds(0, H)] = hf.astype(out_ref.dtype)
        out_ref[pl.ds(rb, batch), pl.ds(H, H)] = hb.astype(out_ref.dtype)
        return (hf, cf, hb, cb)

    zeros = jnp.zeros((batch, H), jnp.float32)
    jax.lax.fori_loop(0, seq_len, step, (zeros, zeros, zeros, zeros),
                      unroll=True)


def _run_bilstm_layer(x, layer):
    """Runs one fused bidirectional LSTM layer: (T, B, E) -> (T, B, 2H)."""
    T, B, E = x.shape
    H = layer["w_hh_f"].shape[1]

    # Pack weights so both directions' input projections are one GEMM.
    wih_cat = jnp.concatenate(
        [jnp.asarray(layer["w_ih_f"], jnp.float32).T,     # (E, 4H)
         jnp.asarray(layer["w_ih_b"], jnp.float32).T],    # (E, 4H)
        axis=1)                                           # (E, 8H)
    b_cat = jnp.concatenate(
        [jnp.asarray(layer["b_ih_f"], jnp.float32)
         + jnp.asarray(layer["b_hh_f"], jnp.float32),
         jnp.asarray(layer["b_ih_b"], jnp.float32)
         + jnp.asarray(layer["b_hh_b"], jnp.float32)],
        axis=0).reshape(1, 8 * H)                         # (1, 8H)
    whh_f = jnp.asarray(layer["w_hh_f"], jnp.float32).T   # (H, 4H)
    whh_b = jnp.asarray(layer["w_hh_b"], jnp.float32).T   # (H, 4H)

    x2d = x.reshape(T * B, E)                             # free (contiguous)

    kernel = functools.partial(_bilstm_kernel, seq_len=T, batch=B)

    out2d = pl.pallas_call(
        kernel,
        out_shape=jax.ShapeDtypeStruct((T * B, 2 * H), x.dtype),
        grid_spec=pltpu.PrefetchScalarGridSpec(
            num_scalar_prefetch=0,
            grid=(1,),
            in_specs=[
                pl.BlockSpec((T * B, E), lambda i: (0, 0)),      # x
                pl.BlockSpec((E, 8 * H), lambda i: (0, 0)),      # [Wih_f|Wih_b]^T
                pl.BlockSpec((H, 4 * H), lambda i: (0, 0)),      # Whh_f^T
                pl.BlockSpec((H, 4 * H), lambda i: (0, 0)),      # Whh_b^T
                pl.BlockSpec((1, 8 * H), lambda i: (0, 0)),      # bias
            ],
            out_specs=pl.BlockSpec((T * B, 2 * H), lambda i: (0, 0)),
            scratch_shapes=[
                pltpu.VMEM((T * B, 8 * H), jnp.float32),  # hoisted input gates
            ],
        ),
        compiler_params=pltpu.CompilerParams(
            dimension_semantics=("arbitrary",)),
    )(x2d, wih_cat, whh_f, whh_b, b_cat)

    return out2d.reshape(T, B, 2 * H)


def my_rnn_forward(inputs, params):
    """MyRNN.forward for config.rnn == 'lstm' (bidirectional).

    inputs: (T, B, E); returns out: (T, B, 2*H) — matches PyTorch nn.LSTM `out`.
    """
    x = inputs
    for layer in params["layers"]:
        x = _run_bilstm_layer(x, layer)
    # TODO(synk): inter-layer dropout (config.dropout) not applied — inference-mode forward.
    return x


def init_lstm_params(key, embed_dim, hidden_dim, num_layers=1):
    """Deterministic PyTorch-style uniform(-1/sqrt(H), 1/sqrt(H)) init."""
    k = 1.0 / jnp.sqrt(jnp.float32(hidden_dim))
    layers = []
    in_dim = embed_dim
    for _ in range(num_layers):
        layer = {}
        for suffix in ("f", "b"):
            key, k1, k2, k3, k4 = jax.random.split(key, 5)
            layer[f"w_ih_{suffix}"] = jax.random.uniform(
                k1, (4 * hidden_dim, in_dim), jnp.float32, -k, k)
            layer[f"w_hh_{suffix}"] = jax.random.uniform(
                k2, (4 * hidden_dim, hidden_dim), jnp.float32, -k, k)
            layer[f"b_ih_{suffix}"] = jax.random.uniform(
                k3, (4 * hidden_dim,), jnp.float32, -k, k)
            layer[f"b_hh_{suffix}"] = jax.random.uniform(
                k4, (4 * hidden_dim,), jnp.float32, -k, k)
        layers.append(layer)
        in_dim = 2 * hidden_dim
    return {"layers": layers}


if __name__ == "__main__":
    # Small shapes implied by the module: seq=8, batch=2, embed_dim=16, hidden=32.
    T, B, E, H = 8, 2, 16, 32
    key = jax.random.PRNGKey(0)
    key, k_in = jax.random.split(key)

    inputs = jax.random.normal(k_in, (T, B, E), jnp.float32)   # (seq, batch, embed)
    params = init_lstm_params(key, embed_dim=E, hidden_dim=H, num_layers=1)

    out = my_rnn_forward(inputs, params)
    out = jax.block_until_ready(out)

    assert out.shape == (T, B, 2 * H), out.shape
    print("KERNEL_OK")
</pallas_src>

<mosaic_0001>
module attributes {stable_mosaic.version = 11 : i64} {
  func.func @_bilstm_kernel(%arg0: i32, %arg1: memref<16x16xf32, #tpu.memory_space<vmem>>, %arg2: memref<16x256xf32, #tpu.memory_space<vmem>>, %arg3: memref<32x128xf32, #tpu.memory_space<vmem>>, %arg4: memref<32x128xf32, #tpu.memory_space<vmem>>, %arg5: memref<1x256xf32, #tpu.memory_space<vmem>>, %arg6: memref<16x64xf32, #tpu.memory_space<vmem>>, %arg7: memref<16x256xf32, #tpu.memory_space<vmem>>) attributes {dimension_semantics = [#tpu.dimension_semantics<arbitrary>], iteration_bounds = array<i64: 1>, scalar_prefetch = 0 : i64, scratch_operands = 1 : i64, tpu.core_type = #tpu.core_type<tc>, window_params = [{pipeline_mode = #tpu.pipeline_mode<synchronous>, transform_indices = @transform_0, window_bounds = array<i64: 16, 16>}, {pipeline_mode = #tpu.pipeline_mode<synchronous>, transform_indices = @transform_1, window_bounds = array<i64: 16, 256>}, {pipeline_mode = #tpu.pipeline_mode<synchronous>, transform_indices = @transform_2, window_bounds = array<i64: 32, 128>}, {pipeline_mode = #tpu.pipeline_mode<synchronous>, transform_indices = @transform_3, window_bounds = array<i64: 32, 128>}, {pipeline_mode = #tpu.pipeline_mode<synchronous>, transform_indices = @transform_4, window_bounds = array<i64: 1, 256>}, {pipeline_mode = #tpu.pipeline_mode<synchronous>, transform_indices = @transform_5, window_bounds = array<i64: 16, 64>}]} {
    %c0 = arith.constant 0 : index
    %c0_0 = arith.constant 0 : index
    %0 = vector.load %arg1[%c0, %c0_0] : memref<16x16xf32, #tpu.memory_space<vmem>>, vector<16x16xf32>
    %c0_1 = arith.constant 0 : index
    %c0_2 = arith.constant 0 : index
    %1 = vector.load %arg2[%c0_1, %c0_2] : memref<16x256xf32, #tpu.memory_space<vmem>>, vector<16x256xf32>
    %cst = arith.constant dense<0.000000e+00> : vector<16x256xf32>
    %2 = tpu.matmul %0, %1, %cst {dimension_numbers = #tpu.dot_dimension_numbers<[1], [0], [0], [1], [0, 0, 1, 1], [], []>} : vector<16x16xf32>, vector<16x256xf32>, vector<16x256xf32> -> vector<16x256xf32>
    %c0_3 = arith.constant 0 : index
    %c0_4 = arith.constant 0 : index
    %3 = vector.load %arg5[%c0_3, %c0_4] : memref<1x256xf32, #tpu.memory_space<vmem>>, vector<1x256xf32>
    %4 = vector.broadcast %3 : vector<1x256xf32> to vector<16x256xf32>
    %5 = arith.addf %2, %4 : vector<16x256xf32>
    %c0_5 = arith.constant 0 : index
    %c0_6 = arith.constant 0 : index
    %6 = vector.load %arg7[%c0_5, %c0_6] : memref<16x256xf32, #tpu.memory_space<vmem>>, vector<16x256xf32>
    tpu.vector_store %arg7[%c0_5, %c0_6], %5 {strides = array<i32>} : memref<16x256xf32, #tpu.memory_space<vmem>>, vector<16x256xf32>,
    %c0_7 = arith.constant 0 : index
    %c0_8 = arith.constant 0 : index
    %7 = vector.load %arg3[%c0_7, %c0_8] : memref<32x128xf32, #tpu.memory_space<vmem>>, vector<32x128xf32>
    %c0_9 = arith.constant 0 : index
    %c0_10 = arith.constant 0 : index
    %8 = vector.load %arg4[%c0_9, %c0_10] : memref<32x128xf32, #tpu.memory_space<vmem>>, vector<32x128xf32>
    %cst_11 = arith.constant 0.000000e+00 : f32
    %9 = vector.broadcast %cst_11 : f32 to vector<2x32xf32>
    %c0_i32 = arith.constant 0 : i32
    %c2_i32 = arith.constant 2 : i32
    %10 = arith.muli %c0_i32, %c2_i32 : i32
    %c7_i32 = arith.constant 7 : i32
    %11 = arith.subi %c7_i32, %c0_i32 : i32
    %c2_i32_12 = arith.constant 2 : i32
    %12 = arith.muli %11, %c2_i32_12 : i32
    %13 = arith.index_cast %10 : i32 to index
    %c0_13 = arith.constant 0 : index
    %14 = vector.load %arg7[%13, %c0_13] : memref<16x256xf32, #tpu.memory_space<vmem>>, vector<2x128xf32>
    %cst_14 = arith.constant dense<0.000000e+00> : vector<2x128xf32>
    %15 = tpu.matmul %9, %7, %cst_14 {dimension_numbers = #tpu.dot_dimension_numbers<[1], [0], [0], [1], [0, 0, 1, 1], [], []>} : vector<2x32xf32>, vector<32x128xf32>, vector<2x128xf32> -> vector<2x128xf32>
    %16 = arith.addf %14, %15 : vector<2x128xf32>
    %17 = arith.index_cast %12 : i32 to index
    %c128 = arith.constant 128 : index
    %18 = vector.load %arg7[%17, %c128] : memref<16x256xf32, #tpu.memory_space<vmem>>, vector<2x128xf32>
    %cst_15 = arith.constant dense<0.000000e+00> : vector<2x128xf32>
    %19 = tpu.matmul %9, %8, %cst_15 {dimension_numbers = #tpu.dot_dimension_numbers<[1], [0], [0], [1], [0, 0, 1, 1], [], []>} : vector<2x32xf32>, vector<32x128xf32>, vector<2x128xf32> -> vector<2x128xf32>
    %20 = arith.addf %18, %19 : vector<2x128xf32>
    %21 = vector.extract_strided_slice %16 {offsets = [0, 0], sizes = [2, 32], strides = [1, 1]} : vector<2x128xf32> to vector<2x32xf32>
    %22 = arith.negf %21 : vector<2x32xf32>
    %23 = math.exp %22 : vector<2x32xf32>
    %cst_16 = arith.constant 1.000000e+00 : f32
    %24 = vector.broadcast %cst_16 : f32 to vector<2x32xf32>
    %25 = arith.addf %24, %23 : vector<2x32xf32>
    %26 = arith.divf %24, %25 : vector<2x32xf32>
    %27 = vector.extract_strided_slice %16 {offsets = [0, 32], sizes = [2, 32], strides = [1, 1]} : vector<2x128xf32> to vector<2x32xf32>
    %28 = arith.negf %27 : vector<2x32xf32>
    %29 = math.exp %28 : vector<2x32xf32>
    %cst_17 = arith.constant 1.000000e+00 : f32
    %30 = vector.broadcast %cst_17 : f32 to vector<2x32xf32>
    %31 = arith.addf %30, %29 : vector<2x32xf32>
    %32 = arith.divf %30, %31 : vector<2x32xf32>
    %33 = vector.extract_strided_slice %16 {offsets = [0, 64], sizes = [2, 32], strides = [1, 1]} : vector<2x128xf32> to vector<2x32xf32>
    %34 = math.tanh %33 : vector<2x32xf32>
    %35 = vector.extract_strided_slice %16 {offsets = [0, 96], sizes = [2, 32], strides = [1, 1]} : vector<2x128xf32> to vector<2x32xf32>
    %36 = arith.negf %35 : vector<2x32xf32>
    %37 = math.exp %36 : vector<2x32xf32>
    %cst_18 = arith.constant 1.000000e+00 : f32
    %38 = vector.broadcast %cst_18 : f32 to vector<2x32xf32>
    %39 = arith.addf %38, %37 : vector<2x32xf32>
    %40 = arith.divf %38, %39 : vector<2x32xf32>
    %41 = arith.mulf %32, %9 : vector<2x32xf32>
    %42 = arith.mulf %26, %34 : vector<2x32xf32>
    %43 = arith.addf %41, %42 : vector<2x32xf32>
    %44 = math.tanh %43 : vector<2x32xf32>
    %45 = arith.mulf %40, %44 : vector<2x32xf32>
    %46 = vector.extract_strided_slice %20 {offsets = [0, 0], sizes = [2, 32], strides = [1, 1]} : vector<2x128xf32> to vector<2x32xf32>
    %47 = arith.negf %46 : vector<2x32xf32>
    %48 = math.exp %47 : vector<2x32xf32>
    %cst_19 = arith.constant 1.000000e+00 : f32
    %49 = vector.broadcast %cst_19 : f32 to vector<2x32xf32>
    %50 = arith.addf %49, %48 : vector<2x32xf32>
    %51 = arith.divf %49, %50 : vector<2x32xf32>
    %52 = vector.extract_strided_slice %20 {offsets = [0, 32], sizes = [2, 32], strides = [1, 1]} : vector<2x128xf32> to vector<2x32xf32>
    %53 = arith.negf %52 : vector<2x32xf32>
    %54 = math.exp %53 : vector<2x32xf32>
    %cst_20 = arith.constant 1.000000e+00 : f32
    %55 = vector.broadcast %cst_20 : f32 to vector<2x32xf32>
    %56 = arith.addf %55, %54 : vector<2x32xf32>
    %57 = arith.divf %55, %56 : vector<2x32xf32>
    %58 = vector.extract_strided_slice %20 {offsets = [0, 64], sizes = [2, 32], strides = [1, 1]} : vector<2x128xf32> to vector<2x32xf32>
    %59 = math.tanh %58 : vector<2x32xf32>
    %60 = vector.extract_strided_slice %20 {offsets = [0, 96], sizes = [2, 32], strides = [1, 1]} : vector<2x128xf32> to vector<2x32xf32>
    %61 = arith.negf %60 : vector<2x32xf32>
    %62 = math.exp %61 : vector<2x32xf32>
    %cst_21 = arith.constant 1.000000e+00 : f32
    %63 = vector.broadcast %cst_21 : f32 to vector<2x32xf32>
    %64 = arith.addf %63, %62 : vector<2x32xf32>
    %65 = arith.divf %63, %64 : vector<2x32xf32>
    %66 = arith.mulf %57, %9 : vector<2x32xf32>
    %67 = arith.mulf %51, %59 : vector<2x32xf32>
    %68 = arith.addf %66, %67 : vector<2x32xf32>
    %69 = math.tanh %68 : vector<2x32xf32>
    %70 = arith.mulf %65, %69 : vector<2x32xf32>
    %71 = arith.index_cast %10 : i32 to index
    %c0_22 = arith.constant 0 : index
    %72 = vector.load %arg6[%71, %c0_22] : memref<16x64xf32, #tpu.memory_space<vmem>>, vector<2x32xf32>
    tpu.vector_store %arg6[%71, %c0_22], %45 {strides = array<i32>} : memref<16x64xf32, #tpu.memory_space<vmem>>, vector<2x32xf32>,
    %73 = arith.index_cast %12 : i32 to index
    %c32 = arith.constant 32 : index
    %74 = vector.load %arg6[%73, %c32] : memref<16x64xf32, #tpu.memory_space<vmem>>, vector<2x32xf32>
    tpu.vector_store %arg6[%73, %c32], %70 {strides = array<i32>} : memref<16x64xf32, #tpu.memory_space<vmem>>, vector<2x32xf32>,
    %c1_i32 = arith.constant 1 : i32
    %c2_i32_23 = arith.constant 2 : i32
    %75 = arith.muli %c1_i32, %c2_i32_23 : i32
    %c7_i32_24 = arith.constant 7 : i32
    %76 = arith.subi %c7_i32_24, %c1_i32 : i32
    %c2_i32_25 = arith.constant 2 : i32
    %77 = arith.muli %76, %c2_i32_25 : i32
    %78 = arith.index_cast %75 : i32 to index
    %c0_26 = arith.constant 0 : index
    %79 = vector.load %arg7[%78, %c0_26] : memref<16x256xf32, #tpu.memory_space<vmem>>, vector<2x128xf32>
    %cst_27 = arith.constant dense<0.000000e+00> : vector<2x128xf32>
    %80 = tpu.matmul %45, %7, %cst_27 {dimension_numbers = #tpu.dot_dimension_numbers<[1], [0], [0], [1], [0, 0, 1, 1], [], []>} : vector<2x32xf32>, vector<32x128xf32>, vector<2x128xf32> -> vector<2x128xf32>
    %81 = arith.addf %79, %80 : vector<2x128xf32>
    %82 = arith.index_cast %77 : i32 to index
    %c128_28 = arith.constant 128 : index
    %83 = vector.load %arg7[%82, %c128_28] : memref<16x256xf32, #tpu.memory_space<vmem>>, vector<2x128xf32>
    %cst_29 = arith.constant dense<0.000000e+00> : vector<2x128xf32>
    %84 = tpu.matmul %70, %8, %cst_29 {dimension_numbers = #tpu.dot_dimension_numbers<[1], [0], [0], [1], [0, 0, 1, 1], [], []>} : vector<2x32xf32>, vector<32x128xf32>, vector<2x128xf32> -> vector<2x128xf32>
    %85 = arith.addf %83, %84 : vector<2x128xf32>
    %86 = vector.extract_strided_slice %81 {offsets = [0, 0], sizes = [2, 32], strides = [1, 1]} : vector<2x128xf32> to vector<2x32xf32>
    %87 = arith.negf %86 : vector<2x32xf32>
    %88 = math.exp %87 : vector<2x32xf32>
    %cst_30 = arith.constant 1.000000e+00 : f32
    %89 = vector.broadcast %cst_30 : f32 to vector<2x32xf32>
    %90 = arith.addf %89, %88 : vector<2x32xf32>
    %91 = arith.divf %89, %90 : vector<2x32xf32>
    %92 = vector.extract_strided_slice %81 {offsets = [0, 32], sizes = [2, 32], strides = [1, 1]} : vector<2x128xf32> to vector<2x32xf32>
    %93 = arith.negf %92 : vector<2x32xf32>
    %94 = math.exp %93 : vector<2x32xf32>
    %cst_31 = arith.constant 1.000000e+00 : f32
    %95 = vector.broadcast %cst_31 : f32 to vector<2x32xf32>
    %96 = arith.addf %95, %94 : vector<2x32xf32>
    %97 = arith.divf %95, %96 : vector<2x32xf32>
    %98 = vector.extract_strided_slice %81 {offsets = [0, 64], sizes = [2, 32], strides = [1, 1]} : vector<2x128xf32> to vector<2x32xf32>
    %99 = math.tanh %98 : vector<2x32xf32>
    %100 = vector.extract_strided_slice %81 {offsets = [0, 96], sizes = [2, 32], strides = [1, 1]} : vector<2x128xf32> to vector<2x32xf32>
    %101 = arith.negf %100 : vector<2x32xf32>
    %102 = math.exp %101 : vector<2x32xf32>
    %cst_32 = arith.constant 1.000000e+00 : f32
    %103 = vector.broadcast %cst_32 : f32 to vector<2x32xf32>
    %104 = arith.addf %103, %102 : vector<2x32xf32>
    %105 = arith.divf %103, %104 : vector<2x32xf32>
    %106 = arith.mulf %97, %43 : vector<2x32xf32>
    %107 = arith.mulf %91, %99 : vector<2x32xf32>
    %108 = arith.addf %106, %107 : vector<2x32xf32>
    %109 = math.tanh %108 : vector<2x32xf32>
    %110 = arith.mulf %105, %109 : vector<2x32xf32>
    %111 = vector.extract_strided_slice %85 {offsets = [0, 0], sizes = [2, 32], strides = [1, 1]} : vector<2x128xf32> to vector<2x32xf32>
    %112 = arith.negf %111 : vector<2x32xf32>
    %113 = math.exp %112 : vector<2x32xf32>
    %cst_33 = arith.constant 1.000000e+00 : f32
    %114 = vector.broadcast %cst_33 : f32 to vector<2x32xf32>
    %115 = arith.addf %114, %113 : vector<2x32xf32>
    %116 = arith.divf %114, %115 : vector<2x32xf32>
    %117 = vector.extract_strided_slice %85 {offsets = [0, 32], sizes = [2, 32], strides = [1, 1]} : vector<2x128xf32> to vector<2x32xf32>
    %118 = arith.negf %117 : vector<2x32xf32>
    %119 = math.exp %118 : vector<2x32xf32>
    %cst_34 = arith.constant 1.000000e+00 : f32
    %120 = vector.broadcast %cst_34 : f32 to vector<2x32xf32>
    %121 = arith.addf %120, %119 : vector<2x32xf32>
    %122 = arith.divf %120, %121 : vector<2x32xf32>
    %123 = vector.extract_strided_slice %85 {offsets = [0, 64], sizes = [2, 32], strides = [1, 1]} : vector<2x128xf32> to vector<2x32xf32>
    %124 = math.tanh %123 : vector<2x32xf32>
    %125 = vector.extract_strided_slice %85 {offsets = [0, 96], sizes = [2, 32], strides = [1, 1]} : vector<2x128xf32> to vector<2x32xf32>
    %126 = arith.negf %125 : vector<2x32xf32>
    %127 = math.exp %126 : vector<2x32xf32>
    %cst_35 = arith.constant 1.000000e+00 : f32
    %128 = vector.broadcast %cst_35 : f32 to vector<2x32xf32>
    %129 = arith.addf %128, %127 : vector<2x32xf32>
    %130 = arith.divf %128, %129 : vector<2x32xf32>
    %131 = arith.mulf %122, %68 : vector<2x32xf32>
    %132 = arith.mulf %116, %124 : vector<2x32xf32>
    %133 = arith.addf %131, %132 : vector<2x32xf32>
    %134 = math.tanh %133 : vector<2x32xf32>
    %135 = arith.mulf %130, %134 : vector<2x32xf32>
    %136 = arith.index_cast %75 : i32 to index
    %c0_36 = arith.constant 0 : index
    %137 = vector.load %arg6[%136, %c0_36] : memref<16x64xf32, #tpu.memory_space<vmem>>, vector<2x32xf32>
    tpu.vector_store %arg6[%136, %c0_36], %110 {strides = array<i32>} : memref<16x64xf32, #tpu.memory_space<vmem>>, vector<2x32xf32>,
    %138 = arith.index_cast %77 : i32 to index
    %c32_37 = arith.constant 32 : index
    %139 = vector.load %arg6[%138, %c32_37] : memref<16x64xf32, #tpu.memory_space<vmem>>, vector<2x32xf32>
    tpu.vector_store %arg6[%138, %c32_37], %135 {strides = array<i32>} : memref<16x64xf32, #tpu.memory_space<vmem>>, vector<2x32xf32>,
    %c2_i32_38 = arith.constant 2 : i32
    %c2_i32_39 = arith.constant 2 : i32
    %140 = arith.muli %c2_i32_38, %c2_i32_39 : i32
    %c7_i32_40 = arith.constant 7 : i32
    %141 = arith.subi %c7_i32_40, %c2_i32_38 : i32
    %c2_i32_41 = arith.constant 2 : i32
    %142 = arith.muli %141, %c2_i32_41 : i32
    %143 = arith.index_cast %140 : i32 to index
    %c0_42 = arith.constant 0 : index
    %144 = vector.load %arg7[%143, %c0_42] : memref<16x256xf32, #tpu.memory_space<vmem>>, vector<2x128xf32>
    %cst_43 = arith.constant dense<0.000000e+00> : vector<2x128xf32>
    %145 = tpu.matmul %110, %7, %cst_43 {dimension_numbers = #tpu.dot_dimension_numbers<[1], [0], [0], [1], [0, 0, 1, 1], [], []>} : vector<2x32xf32>, vector<32x128xf32>, vector<2x128xf32> -> vector<2x128xf32>
    %146 = arith.addf %144, %145 : vector<2x128xf32>
    %147 = arith.index_cast %142 : i32 to index
    %c128_44 = arith.constant 128 : index
    %148 = vector.load %arg7[%147, %c128_44] : memref<16x256xf32, #tpu.memory_space<vmem>>, vector<2x128xf32>
    %cst_45 = arith.constant dense<0.000000e+00> : vector<2x128xf32>
    %149 = tpu.matmul %135, %8, %cst_45 {dimension_numbers = #tpu.dot_dimension_numbers<[1], [0], [0], [1], [0, 0, 1, 1], [], []>} : vector<2x32xf32>, vector<32x128xf32>, vector<2x128xf32> -> vector<2x128xf32>
    %150 = arith.addf %148, %149 : vector<2x128xf32>
    %151 = vector.extract_strided_slice %146 {offsets = [0, 0], sizes = [2, 32], strides = [1, 1]} : vector<2x128xf32> to vector<2x32xf32>
    %152 = arith.negf %151 : vector<2x32xf32>
    %153 = math.exp %152 : vector<2x32xf32>
    %cst_46 = arith.constant 1.000000e+00 : f32
    %154 = vector.broadcast %cst_46 : f32 to vector<2x32xf32>
    %155 = arith.addf %154, %153 : vector<2x32xf32>
    %156 = arith.divf %154, %155 : vector<2x32xf32>
    %157 = vector.extract_strided_slice %146 {offsets = [0, 32], sizes = [2, 32], strides = [1, 1]} : vector<2x128xf32> to vector<2x32xf32>
    %158 = arith.negf %157 : vector<2x32xf32>
    %159 = math.exp %158 : vector<2x32xf32>
    %cst_47 = arith.constant 1.000000e+00 : f32
    %160 = vector.broadcast %cst_47 : f32 to vector<2x32xf32>
    %161 = arith.addf %160, %159 : vector<2x32xf32>
    %162 = arith.divf %160, %161 : vector<2x32xf32>
    %163 = vector.extract_strided_slice %146 {offsets = [0, 64], sizes = [2, 32], strides = [1, 1]} : vector<2x128xf32> to vector<2x32xf32>
    %164 = math.tanh %163 : vector<2x32xf32>
    %165 = vector.extract_strided_slice %146 {offsets = [0, 96], sizes = [2, 32], strides = [1, 1]} : vector<2x128xf32> to vector<2x32xf32>
    %166 = arith.negf %165 : vector<2x32xf32>
    %167 = math.exp %166 : vector<2x32xf32>
    %cst_48 = arith.constant 1.000000e+00 : f32
    %168 = vector.broadcast %cst_48 : f32 to vector<2x32xf32>
    %169 = arith.addf %168, %167 : vector<2x32xf32>
    %170 = arith.divf %168, %169 : vector<2x32xf32>
    %171 = arith.mulf %162, %108 : vector<2x32xf32>
    %172 = arith.mulf %156, %164 : vector<2x32xf32>
    %173 = arith.addf %171, %172 : vector<2x32xf32>
    %174 = math.tanh %173 : vector<2x32xf32>
    %175 = arith.mulf %170, %174 : vector<2x32xf32>
    %176 = vector.extract_strided_slice %150 {offsets = [0, 0], sizes = [2, 32], strides = [1, 1]} : vector<2x128xf32> to vector<2x32xf32>
    %177 = arith.negf %176 : vector<2x32xf32>
    %178 = math.exp %177 : vector<2x32xf32>
    %cst_49 = arith.constant 1.000000e+00 : f32
    %179 = vector.broadcast %cst_49 : f32 to vector<2x32xf32>
    %180 = arith.addf %179, %178 : vector<2x32xf32>
    %181 = arith.divf %179, %180 : vector<2x32xf32>
    %182 = vector.extract_strided_slice %150 {offsets = [0, 32], sizes = [2, 32], strides = [1, 1]} : vector<2x128xf32> to vector<2x32xf32>
    %183 = arith.negf %182 : vector<2x32xf32>
    %184 = math.exp %183 : vector<2x32xf32>
    %cst_50 = arith.constant 1.000000e+00 : f32
    %185 = vector.broadcast %cst_50 : f32 to vector<2x32xf32>
    %186 = arith.addf %185, %184 : vector<2x32xf32>
    %187 = arith.divf %185, %186 : vector<2x32xf32>
    %188 = vector.extract_strided_slice %150 {offsets = [0, 64], sizes = [2, 32], strides = [1, 1]} : vector<2x128xf32> to vector<2x32xf32>
    %189 = math.tanh %188 : vector<2x32xf32>
    %190 = vector.extract_strided_slice %150 {offsets = [0, 96], sizes = [2, 32], strides = [1, 1]} : vector<2x128xf32> to vector<2x32xf32>
    %191 = arith.negf %190 : vector<2x32xf32>
    %192 = math.exp %191 : vector<2x32xf32>
    %cst_51 = arith.constant 1.000000e+00 : f32
    %193 = vector.broadcast %cst_51 : f32 to vector<2x32xf32>
    %194 = arith.addf %193, %192 : vector<2x32xf32>
    %195 = arith.divf %193, %194 : vector<2x32xf32>
    %196 = arith.mulf %187, %133 : vector<2x32xf32>
    %197 = arith.mulf %181, %189 : vector<2x32xf32>
    %198 = arith.addf %196, %197 : vector<2x32xf32>
    %199 = math.tanh %198 : vector<2x32xf32>
    %200 = arith.mulf %195, %199 : vector<2x32xf32>
    %201 = arith.index_cast %140 : i32 to index
    %c0_52 = arith.constant 0 : index
    %202 = vector.load %arg6[%201, %c0_52] : memref<16x64xf32, #tpu.memory_space<vmem>>, vector<2x32xf32>
    tpu.vector_store %arg6[%201, %c0_52], %175 {strides = array<i32>} : memref<16x64xf32, #tpu.memory_space<vmem>>, vector<2x32xf32>,
    %203 = arith.index_cast %142 : i32 to index
    %c32_53 = arith.constant 32 : index
    %204 = vector.load %arg6[%203, %c32_53] : memref<16x64xf32, #tpu.memory_space<vmem>>, vector<2x32xf32>
    tpu.vector_store %arg6[%203, %c32_53], %200 {strides = array<i32>} : memref<16x64xf32, #tpu.memory_space<vmem>>, vector<2x32xf32>,
    %c3_i32 = arith.constant 3 : i32
    %c2_i32_54 = arith.constant 2 : i32
    %205 = arith.muli %c3_i32, %c2_i32_54 : i32
    %c7_i32_55 = arith.constant 7 : i32
    %206 = arith.subi %c7_i32_55, %c3_i32 : i32
    %c2_i32_56 = arith.constant 2 : i32
    %207 = arith.muli %206, %c2_i32_56 : i32
    %208 = arith.index_cast %205 : i32 to index
    %c0_57 = arith.constant 0 : index
    %209 = vector.load %arg7[%208, %c0_57] : memref<16x256xf32, #tpu.memory_space<vmem>>, vector<2x128xf32>
    %cst_58 = arith.constant dense<0.000000e+00> : vector<2x128xf32>
    %210 = tpu.matmul %175, %7, %cst_58 {dimension_numbers = #tpu.dot_dimension_numbers<[1], [0], [0], [1], [0, 0, 1, 1], [], []>} : vector<2x32xf32>, vector<32x128xf32>, vector<2x128xf32> -> vector<2x128xf32>
    %211 = arith.addf %209, %210 : vector<2x128xf32>
    %212 = arith.index_cast %207 : i32 to index
    %c128_59 = arith.constant 128 : index
    %213 = vector.load %arg7[%212, %c128_59] : memref<16x256xf32, #tpu.memory_space<vmem>>, vector<2x128xf32>
    %cst_60 = arith.constant dense<0.000000e+00> : vector<2x128xf32>
    %214 = tpu.matmul %200, %8, %cst_60 {dimension_numbers = #tpu.dot_dimension_numbers<[1], [0], [0], [1], [0, 0, 1, 1], [], []>} : vector<2x32xf32>, vector<32x128xf32>, vector<2x128xf32> -> vector<2x128xf32>
    %215 = arith.addf %213, %214 : vector<2x128xf32>
    %216 = vector.extract_strided_slice %211 {offsets = [0, 0], sizes = [2, 32], strides = [1, 1]} : vector<2x128xf32> to vector<2x32xf32>
    %217 = arith.negf %216 : vector<2x32xf32>
    %218 = math.exp %217 : vector<2x32xf32>
    %cst_61 = arith.constant 1.000000e+00 : f32
    %219 = vector.broadcast %cst_61 : f32 to vector<2x32xf32>
    %220 = arith.addf %219, %218 : vector<2x32xf32>
    %221 = arith.divf %219, %220 : vector<2x32xf32>
    %222 = vector.extract_strided_slice %211 {offsets = [0, 32], sizes = [2, 32], strides = [1, 1]} : vector<2x128xf32> to vector<2x32xf32>
    %223 = arith.negf %222 : vector<2x32xf32>
    %224 = math.exp %223 : vector<2x32xf32>
    %cst_62 = arith.constant 1.000000e+00 : f32
    %225 = vector.broadcast %cst_62 : f32 to vector<2x32xf32>
    %226 = arith.addf %225, %224 : vector<2x32xf32>
    %227 = arith.divf %225, %226 : vector<2x32xf32>
    %228 = vector.extract_strided_slice %211 {offsets = [0, 64], sizes = [2, 32], strides = [1, 1]} : vector<2x128xf32> to vector<2x32xf32>
    %229 = math.tanh %228 : vector<2x32xf32>
    %230 = vector.extract_strided_slice %211 {offsets = [0, 96], sizes = [2, 32], strides = [1, 1]} : vector<2x128xf32> to vector<2x32xf32>
    %231 = arith.negf %230 : vector<2x32xf32>
    %232 = math.exp %231 : vector<2x32xf32>
    %cst_63 = arith.constant 1.000000e+00 : f32
    %233 = vector.broadcast %cst_63 : f32 to vector<2x32xf32>
    %234 = arith.addf %233, %232 : vector<2x32xf32>
    %235 = arith.divf %233, %234 : vector<2x32xf32>
    %236 = arith.mulf %227, %173 : vector<2x32xf32>
    %237 = arith.mulf %221, %229 : vector<2x32xf32>
    %238 = arith.addf %236, %237 : vector<2x32xf32>
    %239 = math.tanh %238 : vector<2x32xf32>
    %240 = arith.mulf %235, %239 : vector<2x32xf32>
    %241 = vector.extract_strided_slice %215 {offsets = [0, 0], sizes = [2, 32], strides = [1, 1]} : vector<2x128xf32> to vector<2x32xf32>
    %242 = arith.negf %241 : vector<2x32xf32>
    %243 = math.exp %242 : vector<2x32xf32>
    %cst_64 = arith.constant 1.000000e+00 : f32
    %244 = vector.broadcast %cst_64 : f32 to vector<2x32xf32>
    %245 = arith.addf %244, %243 : vector<2x32xf32>
    %246 = arith.divf %244, %245 : vector<2x32xf32>
    %247 = vector.extract_strided_slice %215 {offsets = [0, 32], sizes = [2, 32], strides = [1, 1]} : vector<2x128xf32> to vector<2x32xf32>
    %248 = arith.negf %247 : vector<2x32xf32>
    %249 = math.exp %248 : vector<2x32xf32>
    %cst_65 = arith.constant 1.000000e+00 : f32
    %250 = vector.broadcast %cst_65 : f32 to vector<2x32xf32>
    %251 = arith.addf %250, %249 : vector<2x32xf32>
    %252 = arith.divf %250, %251 : vector<2x32xf32>
    %253 = vector.extract_strided_slice %215 {offsets = [0, 64], sizes = [2, 32], strides = [1, 1]} : vector<2x128xf32> to vector<2x32xf32>
    %254 = math.tanh %253 : vector<2x32xf32>
    %255 = vector.extract_strided_slice %215 {offsets = [0, 96], sizes = [2, 32], strides = [1, 1]} : vector<2x128xf32> to vector<2x32xf32>
    %256 = arith.negf %255 : vector<2x32xf32>
    %257 = math.exp %256 : vector<2x32xf32>
    %cst_66 = arith.constant 1.000000e+00 : f32
    %258 = vector.broadcast %cst_66 : f32 to vector<2x32xf32>
    %259 = arith.addf %258, %257 : vector<2x32xf32>
    %260 = arith.divf %258, %259 : vector<2x32xf32>
    %261 = arith.mulf %252, %198 : vector<2x32xf32>
    %262 = arith.mulf %246, %254 : vector<2x32xf32>
    %263 = arith.addf %261, %262 : vector<2x32xf32>
    %264 = math.tanh %263 : vector<2x32xf32>
    %265 = arith.mulf %260, %264 : vector<2x32xf32>
    %266 = arith.index_cast %205 : i32 to index
    %c0_67 = arith.constant 0 : index
    %267 = vector.load %arg6[%266, %c0_67] : memref<16x64xf32, #tpu.memory_space<vmem>>, vector<2x32xf32>
    tpu.vector_store %arg6[%266, %c0_67], %240 {strides = array<i32>} : memref<16x64xf32, #tpu.memory_space<vmem>>, vector<2x32xf32>,
    %268 = arith.index_cast %207 : i32 to index
    %c32_68 = arith.constant 32 : index
    %269 = vector.load %arg6[%268, %c32_68] : memref<16x64xf32, #tpu.memory_space<vmem>>, vector<2x32xf32>
    tpu.vector_store %arg6[%268, %c32_68], %265 {strides = array<i32>} : memref<16x64xf32, #tpu.memory_space<vmem>>, vector<2x32xf32>,
    %c4_i32 = arith.constant 4 : i32
    %c2_i32_69 = arith.constant 2 : i32
    %270 = arith.muli %c4_i32, %c2_i32_69 : i32
    %c7_i32_70 = arith.constant 7 : i32
    %271 = arith.subi %c7_i32_70, %c4_i32 : i32
    %c2_i32_71 = arith.constant 2 : i32
    %272 = arith.muli %271, %c2_i32_71 : i32
    %273 = arith.index_cast %270 : i32 to index
    %c0_72 = arith.constant 0 : index
    %274 = vector.load %arg7[%273, %c0_72] : memref<16x256xf32, #tpu.memory_space<vmem>>, vector<2x128xf32>
    %cst_73 = arith.constant dense<0.000000e+00> : vector<2x128xf32>
    %275 = tpu.matmul %240, %7, %cst_73 {dimension_numbers = #tpu.dot_dimension_numbers<[1], [0], [0], [1], [0, 0, 1, 1], [], []>} : vector<2x32xf32>, vector<32x128xf32>, vector<2x128xf32> -> vector<2x128xf32>
    %276 = arith.addf %274, %275 : vector<2x128xf32>
    %277 = arith.index_cast %272 : i32 to index
    %c128_74 = arith.constant 128 : index
    %278 = vector.load %arg7[%277, %c128_74] : memref<16x256xf32, #tpu.memory_space<vmem>>, vector<2x128xf32>
    %cst_75 = arith.constant dense<0.000000e+00> : vector<2x128xf32>
    %279 = tpu.matmul %265, %8, %cst_75 {dimension_numbers = #tpu.dot_dimension_numbers<[1], [0], [0], [1], [0, 0, 1, 1], [], []>} : vector<2x32xf32>, vector<32x128xf32>, vector<2x128xf32> -> vector<2x128xf32>
    %280 = arith.addf %278, %279 : vector<2x128xf32>
    %281 = vector.extract_strided_slice %276 {offsets = [0, 0], sizes = [2, 32], strides = [1, 1]} : vector<2x128xf32> to vector<2x32xf32>
    %282 = arith.negf %281 : vector<2x32xf32>
    %283 = math.exp %282 : vector<2x32xf32>
    %cst_76 = arith.constant 1.000000e+00 : f32
    %284 = vector.broadcast %cst_76 : f32 to vector<2x32xf32>
    %285 = arith.addf %284, %283 : vector<2x32xf32>
    %286 = arith.divf %284, %285 : vector<2x32xf32>
    %287 = vector.extract_strided_slice %276 {offsets = [0, 32], sizes = [2, 32], strides = [1, 1]} : vector<2x128xf32> to vector<2x32xf32>
    %288 = arith.negf %287 : vector<2x32xf32>
    %289 = math.exp %288 : vector<2x32xf32>
    %cst_77 = arith.constant 1.000000e+00 : f32
    %290 = vector.broadcast %cst_77 : f32 to vector<2x32xf32>
    %291 = arith.addf %290, %289 : vector<2x32xf32>
    %292 = arith.divf %290, %291 : vector<2x32xf32>
    %293 = vector.extract_strided_slice %276 {offsets = [0, 64], sizes = [2, 32], strides = [1, 1]} : vector<2x128xf32> to vector<2x32xf32>
    %294 = math.tanh %293 : vector<2x32xf32>
    %295 = vector.extract_strided_slice %276 {offsets = [0, 96], sizes = [2, 32], strides = [1, 1]} : vector<2x128xf32> to vector<2x32xf32>
    %296 = arith.negf %295 : vector<2x32xf32>
    %297 = math.exp %296 : vector<2x32xf32>
    %cst_78 = arith.constant 1.000000e+00 : f32
    %298 = vector.broadcast %cst_78 : f32 to vector<2x32xf32>
    %299 = arith.addf %298, %297 : vector<2x32xf32>
    %300 = arith.divf %298, %299 : vector<2x32xf32>
    %301 = arith.mulf %292, %238 : vector<2x32xf32>
    %302 = arith.mulf %286, %294 : vector<2x32xf32>
    %303 = arith.addf %301, %302 : vector<2x32xf32>
    %304 = math.tanh %303 : vector<2x32xf32>
    %305 = arith.mulf %300, %304 : vector<2x32xf32>
    %306 = vector.extract_strided_slice %280 {offsets = [0, 0], sizes = [2, 32], strides = [1, 1]} : vector<2x128xf32> to vector<2x32xf32>
    %307 = arith.negf %306 : vector<2x32xf32>
    %308 = math.exp %307 : vector<2x32xf32>
    %cst_79 = arith.constant 1.000000e+00 : f32
    %309 = vector.broadcast %cst_79 : f32 to vector<2x32xf32>
    %310 = arith.addf %309, %308 : vector<2x32xf32>
    %311 = arith.divf %309, %310 : vector<2x32xf32>
    %312 = vector.extract_strided_slice %280 {offsets = [0, 32], sizes = [2, 32], strides = [1, 1]} : vector<2x128xf32> to vector<2x32xf32>
    %313 = arith.negf %312 : vector<2x32xf32>
    %314 = math.exp %313 : vector<2x32xf32>
    %cst_80 = arith.constant 1.000000e+00 : f32
    %315 = vector.broadcast %cst_80 : f32 to vector<2x32xf32>
    %316 = arith.addf %315, %314 : vector<2x32xf32>
    %317 = arith.divf %315, %316 : vector<2x32xf32>
    %318 = vector.extract_strided_slice %280 {offsets = [0, 64], sizes = [2, 32], strides = [1, 1]} : vector<2x128xf32> to vector<2x32xf32>
    %319 = math.tanh %318 : vector<2x32xf32>
    %320 = vector.extract_strided_slice %280 {offsets = [0, 96], sizes = [2, 32], strides = [1, 1]} : vector<2x128xf32> to vector<2x32xf32>
    %321 = arith.negf %320 : vector<2x32xf32>
    %322 = math.exp %321 : vector<2x32xf32>
    %cst_81 = arith.constant 1.000000e+00 : f32
    %323 = vector.broadcast %cst_81 : f32 to vector<2x32xf32>
    %324 = arith.addf %323, %322 : vector<2x32xf32>
    %325 = arith.divf %323, %324 : vector<2x32xf32>
    %326 = arith.mulf %317, %263 : vector<2x32xf32>
    %327 = arith.mulf %311, %319 : vector<2x32xf32>
    %328 = arith.addf %326, %327 : vector<2x32xf32>
    %329 = math.tanh %328 : vector<2x32xf32>
    %330 = arith.mulf %325, %329 : vector<2x32xf32>
    %331 = arith.index_cast %270 : i32 to index
    %c0_82 = arith.constant 0 : index
    %332 = vector.load %arg6[%331, %c0_82] : memref<16x64xf32, #tpu.memory_space<vmem>>, vector<2x32xf32>
    tpu.vector_store %arg6[%331, %c0_82], %305 {strides = array<i32>} : memref<16x64xf32, #tpu.memory_space<vmem>>, vector<2x32xf32>,
    %333 = arith.index_cast %272 : i32 to index
    %c32_83 = arith.constant 32 : index
    %334 = vector.load %arg6[%333, %c32_83] : memref<16x64xf32, #tpu.memory_space<vmem>>, vector<2x32xf32>
    tpu.vector_store %arg6[%333, %c32_83], %330 {strides = array<i32>} : memref<16x64xf32, #tpu.memory_space<vmem>>, vector<2x32xf32>,
    %c5_i32 = arith.constant 5 : i32
    %c2_i32_84 = arith.constant 2 : i32
    %335 = arith.muli %c5_i32, %c2_i32_84 : i32
    %c7_i32_85 = arith.constant 7 : i32
    %336 = arith.subi %c7_i32_85, %c5_i32 : i32
    %c2_i32_86 = arith.constant 2 : i32
    %337 = arith.muli %336, %c2_i32_86 : i32
    %338 = arith.index_cast %335 : i32 to index
    %c0_87 = arith.constant 0 : index
    %339 = vector.load %arg7[%338, %c0_87] : memref<16x256xf32, #tpu.memory_space<vmem>>, vector<2x128xf32>
    %cst_88 = arith.constant dense<0.000000e+00> : vector<2x128xf32>
    %340 = tpu.matmul %305, %7, %cst_88 {dimension_numbers = #tpu.dot_dimension_numbers<[1], [0], [0], [1], [0, 0, 1, 1], [], []>} : vector<2x32xf32>, vector<32x128xf32>, vector<2x128xf32> -> vector<2x128xf32>
    %341 = arith.addf %339, %340 : vector<2x128xf32>
    %342 = arith.index_cast %337 : i32 to index
    %c128_89 = arith.constant 128 : index
    %343 = vector.load %arg7[%342, %c128_89] : memref<16x256xf32, #tpu.memory_space<vmem>>, vector<2x128xf32>
    %cst_90 = arith.constant dense<0.000000e+00> : vector<2x128xf32>
    %344 = tpu.matmul %330, %8, %cst_90 {dimension_numbers = #tpu.dot_dimension_numbers<[1], [0], [0], [1], [0, 0, 1, 1], [], []>} : vector<2x32xf32>, vector<32x128xf32>, vector<2x128xf32> -> vector<2x128xf32>
    %345 = arith.addf %343, %344 : vector<2x128xf32>
    %346 = vector.extract_strided_slice %341 {offsets = [0, 0], sizes = [2, 32], strides = [1, 1]} : vector<2x128xf32> to vector<2x32xf32>
    %347 = arith.negf %346 : vector<2x32xf32>
    %348 = math.exp %347 : vector<2x32xf32>
    %cst_91 = arith.constant 1.000000e+00 : f32
    %349 = vector.broadcast %cst_91 : f32 to vector<2x32xf32>
    %350 = arith.addf %349, %348 : vector<2x32xf32>
    %351 = arith.divf %349, %350 : vector<2x32xf32>
    %352 = vector.extract_strided_slice %341 {offsets = [0, 32], sizes = [2, 32], strides = [1, 1]} : vector<2x128xf32> to vector<2x32xf32>
    %353 = arith.negf %352 : vector<2x32xf32>
    %354 = math.exp %353 : vector<2x32xf32>
    %cst_92 = arith.constant 1.000000e+00 : f32
    %355 = vector.broadcast %cst_92 : f32 to vector<2x32xf32>
    %356 = arith.addf %355, %354 : vector<2x32xf32>
    %357 = arith.divf %355, %356 : vector<2x32xf32>
    %358 = vector.extract_strided_slice %341 {offsets = [0, 64], sizes = [2, 32], strides = [1, 1]} : vector<2x128xf32> to vector<2x32xf32>
    %359 = math.tanh %358 : vector<2x32xf32>
    %360 = vector.extract_strided_slice %341 {offsets = [0, 96], sizes = [2, 32], strides = [1, 1]} : vector<2x128xf32> to vector<2x32xf32>
    %361 = arith.negf %360 : vector<2x32xf32>
    %362 = math.exp %361 : vector<2x32xf32>
    %cst_93 = arith.constant 1.000000e+00 : f32
    %363 = vector.broadcast %cst_93 : f32 to vector<2x32xf32>
    %364 = arith.addf %363, %362 : vector<2x32xf32>
    %365 = arith.divf %363, %364 : vector<2x32xf32>
    %366 = arith.mulf %357, %303 : vector<2x32xf32>
    %367 = arith.mulf %351, %359 : vector<2x32xf32>
    %368 = arith.addf %366, %367 : vector<2x32xf32>
    %369 = math.tanh %368 : vector<2x32xf32>
    %370 = arith.mulf %365, %369 : vector<2x32xf32>
    %371 = vector.extract_strided_slice %345 {offsets = [0, 0], sizes = [2, 32], strides = [1, 1]} : vector<2x128xf32> to vector<2x32xf32>
    %372 = arith.negf %371 : vector<2x32xf32>
    %373 = math.exp %372 : vector<2x32xf32>
    %cst_94 = arith.constant 1.000000e+00 : f32
    %374 = vector.broadcast %cst_94 : f32 to vector<2x32xf32>
    %375 = arith.addf %374, %373 : vector<2x32xf32>
    %376 = arith.divf %374, %375 : vector<2x32xf32>
    %377 = vector.extract_strided_slice %345 {offsets = [0, 32], sizes = [2, 32], strides = [1, 1]} : vector<2x128xf32> to vector<2x32xf32>
    %378 = arith.negf %377 : vector<2x32xf32>
    %379 = math.exp %378 : vector<2x32xf32>
    %cst_95 = arith.constant 1.000000e+00 : f32
    %380 = vector.broadcast %cst_95 : f32 to vector<2x32xf32>
    %381 = arith.addf %380, %379 : vector<2x32xf32>
    %382 = arith.divf %380, %381 : vector<2x32xf32>
    %383 = vector.extract_strided_slice %345 {offsets = [0, 64], sizes = [2, 32], strides = [1, 1]} : vector<2x128xf32> to vector<2x32xf32>
    %384 = math.tanh %383 : vector<2x32xf32>
    %385 = vector.extract_strided_slice %345 {offsets = [0, 96], sizes = [2, 32], strides = [1, 1]} : vector<2x128xf32> to vector<2x32xf32>
    %386 = arith.negf %385 : vector<2x32xf32>
    %387 = math.exp %386 : vector<2x32xf32>
    %cst_96 = arith.constant 1.000000e+00 : f32
    %388 = vector.broadcast %cst_96 : f32 to vector<2x32xf32>
    %389 = arith.addf %388, %387 : vector<2x32xf32>
    %390 = arith.divf %388, %389 : vector<2x32xf32>
    %391 = arith.mulf %382, %328 : vector<2x32xf32>
    %392 = arith.mulf %376, %384 : vector<2x32xf32>
    %393 = arith.addf %391, %392 : vector<2x32xf32>
    %394 = math.tanh %393 : vector<2x32xf32>
    %395 = arith.mulf %390, %394 : vector<2x32xf32>
    %396 = arith.index_cast %335 : i32 to index
    %c0_97 = arith.constant 0 : index
    %397 = vector.load %arg6[%396, %c0_97] : memref<16x64xf32, #tpu.memory_space<vmem>>, vector<2x32xf32>
    tpu.vector_store %arg6[%396, %c0_97], %370 {strides = array<i32>} : memref<16x64xf32, #tpu.memory_space<vmem>>, vector<2x32xf32>,
    %398 = arith.index_cast %337 : i32 to index
    %c32_98 = arith.constant 32 : index
    %399 = vector.load %arg6[%398, %c32_98] : memref<16x64xf32, #tpu.memory_space<vmem>>, vector<2x32xf32>
    tpu.vector_store %arg6[%398, %c32_98], %395 {strides = array<i32>} : memref<16x64xf32, #tpu.memory_space<vmem>>, vector<2x32xf32>,
    %c6_i32 = arith.constant 6 : i32
    %c2_i32_99 = arith.constant 2 : i32
    %400 = arith.muli %c6_i32, %c2_i32_99 : i32
    %c7_i32_100 = arith.constant 7 : i32
    %401 = arith.subi %c7_i32_100, %c6_i32 : i32
    %c2_i32_101 = arith.constant 2 : i32
    %402 = arith.muli %401, %c2_i32_101 : i32
    %403 = arith.index_cast %400 : i32 to index
    %c0_102 = arith.constant 0 : index
    %404 = vector.load %arg7[%403, %c0_102] : memref<16x256xf32, #tpu.memory_space<vmem>>, vector<2x128xf32>
    %cst_103 = arith.constant dense<0.000000e+00> : vector<2x128xf32>
    %405 = tpu.matmul %370, %7, %cst_103 {dimension_numbers = #tpu.dot_dimension_numbers<[1], [0], [0], [1], [0, 0, 1, 1], [], []>} : vector<2x32xf32>, vector<32x128xf32>, vector<2x128xf32> -> vector<2x128xf32>
    %406 = arith.addf %404, %405 : vector<2x128xf32>
    %407 = arith.index_cast %402 : i32 to index
    %c128_104 = arith.constant 128 : index
    %408 = vector.load %arg7[%407, %c128_104] : memref<16x256xf32, #tpu.memory_space<vmem>>, vector<2x128xf32>
    %cst_105 = arith.constant dense<0.000000e+00> : vector<2x128xf32>
    %409 = tpu.matmul %395, %8, %cst_105 {dimension_numbers = #tpu.dot_dimension_numbers<[1], [0], [0], [1], [0, 0, 1, 1], [], []>} : vector<2x32xf32>, vector<32x128xf32>, vector<2x128xf32> -> vector<2x128xf32>
    %410 = arith.addf %408, %409 : vector<2x128xf32>
    %411 = vector.extract_strided_slice %406 {offsets = [0, 0], sizes = [2, 32], strides = [1, 1]} : vector<2x128xf32> to vector<2x32xf32>
    %412 = arith.negf %411 : vector<2x32xf32>
    %413 = math.exp %412 : vector<2x32xf32>
    %cst_106 = arith.constant 1.000000e+00 : f32
    %414 = vector.broadcast %cst_106 : f32 to vector<2x32xf32>
    %415 = arith.addf %414, %413 : vector<2x32xf32>
    %416 = arith.divf %414, %415 : vector<2x32xf32>
    %417 = vector.extract_strided_slice %406 {offsets = [0, 32], sizes = [2, 32], strides = [1, 1]} : vector<2x128xf32> to vector<2x32xf32>
    %418 = arith.negf %417 : vector<2x32xf32>
    %419 = math.exp %418 : vector<2x32xf32>
    %cst_107 = arith.constant 1.000000e+00 : f32
    %420 = vector.broadcast %cst_107 : f32 to vector<2x32xf32>
    %421 = arith.addf %420, %419 : vector<2x32xf32>
    %422 = arith.divf %420, %421 : vector<2x32xf32>
    %423 = vector.extract_strided_slice %406 {offsets = [0, 64], sizes = [2, 32], strides = [1, 1]} : vector<2x128xf32> to vector<2x32xf32>
    %424 = math.tanh %423 : vector<2x32xf32>
    %425 = vector.extract_strided_slice %406 {offsets = [0, 96], sizes = [2, 32], strides = [1, 1]} : vector<2x128xf32> to vector<2x32xf32>
    %426 = arith.negf %425 : vector<2x32xf32>
    %427 = math.exp %426 : vector<2x32xf32>
    %cst_108 = arith.constant 1.000000e+00 : f32
    %428 = vector.broadcast %cst_108 : f32 to vector<2x32xf32>
    %429 = arith.addf %428, %427 : vector<2x32xf32>
    %430 = arith.divf %428, %429 : vector<2x32xf32>
    %431 = arith.mulf %422, %368 : vector<2x32xf32>
    %432 = arith.mulf %416, %424 : vector<2x32xf32>
    %433 = arith.addf %431, %432 : vector<2x32xf32>
    %434 = math.tanh %433 : vector<2x32xf32>
    %435 = arith.mulf %430, %434 : vector<2x32xf32>
    %436 = vector.extract_strided_slice %410 {offsets = [0, 0], sizes = [2, 32], strides = [1, 1]} : vector<2x128xf32> to vector<2x32xf32>
    %437 = arith.negf %436 : vector<2x32xf32>
    %438 = math.exp %437 : vector<2x32xf32>
    %cst_109 = arith.constant 1.000000e+00 : f32
    %439 = vector.broadcast %cst_109 : f32 to vector<2x32xf32>
    %440 = arith.addf %439, %438 : vector<2x32xf32>
    %441 = arith.divf %439, %440 : vector<2x32xf32>
    %442 = vector.extract_strided_slice %410 {offsets = [0, 32], sizes = [2, 32], strides = [1, 1]} : vector<2x128xf32> to vector<2x32xf32>
    %443 = arith.negf %442 : vector<2x32xf32>
    %444 = math.exp %443 : vector<2x32xf32>
    %cst_110 = arith.constant 1.000000e+00 : f32
    %445 = vector.broadcast %cst_110 : f32 to vector<2x32xf32>
    %446 = arith.addf %445, %444 : vector<2x32xf32>
    %447 = arith.divf %445, %446 : vector<2x32xf32>
    %448 = vector.extract_strided_slice %410 {offsets = [0, 64], sizes = [2, 32], strides = [1, 1]} : vector<2x128xf32> to vector<2x32xf32>
    %449 = math.tanh %448 : vector<2x32xf32>
    %450 = vector.extract_strided_slice %410 {offsets = [0, 96], sizes = [2, 32], strides = [1, 1]} : vector<2x128xf32> to vector<2x32xf32>
    %451 = arith.negf %450 : vector<2x32xf32>
    %452 = math.exp %451 : vector<2x32xf32>
    %cst_111 = arith.constant 1.000000e+00 : f32
    %453 = vector.broadcast %cst_111 : f32 to vector<2x32xf32>
    %454 = arith.addf %453, %452 : vector<2x32xf32>
    %455 = arith.divf %453, %454 : vector<2x32xf32>
    %456 = arith.mulf %447, %393 : vector<2x32xf32>
    %457 = arith.mulf %441, %449 : vector<2x32xf32>
    %458 = arith.addf %456, %457 : vector<2x32xf32>
    %459 = math.tanh %458 : vector<2x32xf32>
    %460 = arith.mulf %455, %459 : vector<2x32xf32>
    %461 = arith.index_cast %400 : i32 to index
    %c0_112 = arith.constant 0 : index
    %462 = vector.load %arg6[%461, %c0_112] : memref<16x64xf32, #tpu.memory_space<vmem>>, vector<2x32xf32>
    tpu.vector_store %arg6[%461, %c0_112], %435 {strides = array<i32>} : memref<16x64xf32, #tpu.memory_space<vmem>>, vector<2x32xf32>,
    %463 = arith.index_cast %402 : i32 to index
    %c32_113 = arith.constant 32 : index
    %464 = vector.load %arg6[%463, %c32_113] : memref<16x64xf32, #tpu.memory_space<vmem>>, vector<2x32xf32>
    tpu.vector_store %arg6[%463, %c32_113], %460 {strides = array<i32>} : memref<16x64xf32, #tpu.memory_space<vmem>>, vector<2x32xf32>,
    %c7_i32_114 = arith.constant 7 : i32
    %c2_i32_115 = arith.constant 2 : i32
    %465 = arith.muli %c7_i32_114, %c2_i32_115 : i32
    %c7_i32_116 = arith.constant 7 : i32
    %466 = arith.subi %c7_i32_116, %c7_i32_114 : i32
    %c2_i32_117 = arith.constant 2 : i32
    %467 = arith.muli %466, %c2_i32_117 : i32
    %468 = arith.index_cast %465 : i32 to index
    %c0_118 = arith.constant 0 : index
    %469 = vector.load %arg7[%468, %c0_118] : memref<16x256xf32, #tpu.memory_space<vmem>>, vector<2x128xf32>
    %cst_119 = arith.constant dense<0.000000e+00> : vector<2x128xf32>
    %470 = tpu.matmul %435, %7, %cst_119 {dimension_numbers = #tpu.dot_dimension_numbers<[1], [0], [0], [1], [0, 0, 1, 1], [], []>} : vector<2x32xf32>, vector<32x128xf32>, vector<2x128xf32> -> vector<2x128xf32>
    %471 = arith.addf %469, %470 : vector<2x128xf32>
    %472 = arith.index_cast %467 : i32 to index
    %c128_120 = arith.constant 128 : index
    %473 = vector.load %arg7[%472, %c128_120] : memref<16x256xf32, #tpu.memory_space<vmem>>, vector<2x128xf32>
    %cst_121 = arith.constant dense<0.000000e+00> : vector<2x128xf32>
    %474 = tpu.matmul %460, %8, %cst_121 {dimension_numbers = #tpu.dot_dimension_numbers<[1], [0], [0], [1], [0, 0, 1, 1], [], []>} : vector<2x32xf32>, vector<32x128xf32>, vector<2x128xf32> -> vector<2x128xf32>
    %475 = arith.addf %473, %474 : vector<2x128xf32>
    %476 = vector.extract_strided_slice %471 {offsets = [0, 0], sizes = [2, 32], strides = [1, 1]} : vector<2x128xf32> to vector<2x32xf32>
    %477 = arith.negf %476 : vector<2x32xf32>
    %478 = math.exp %477 : vector<2x32xf32>
    %cst_122 = arith.constant 1.000000e+00 : f32
    %479 = vector.broadcast %cst_122 : f32 to vector<2x32xf32>
    %480 = arith.addf %479, %478 : vector<2x32xf32>
    %481 = arith.divf %479, %480 : vector<2x32xf32>
    %482 = vector.extract_strided_slice %471 {offsets = [0, 32], sizes = [2, 32], strides = [1, 1]} : vector<2x128xf32> to vector<2x32xf32>
    %483 = arith.negf %482 : vector<2x32xf32>
    %484 = math.exp %483 : vector<2x32xf32>
    %cst_123 = arith.constant 1.000000e+00 : f32
    %485 = vector.broadcast %cst_123 : f32 to vector<2x32xf32>
    %486 = arith.addf %485, %484 : vector<2x32xf32>
    %487 = arith.divf %485, %486 : vector<2x32xf32>
    %488 = vector.extract_strided_slice %471 {offsets = [0, 64], sizes = [2, 32], strides = [1, 1]} : vector<2x128xf32> to vector<2x32xf32>
    %489 = math.tanh %488 : vector<2x32xf32>
    %490 = vector.extract_strided_slice %471 {offsets = [0, 96], sizes = [2, 32], strides = [1, 1]} : vector<2x128xf32> to vector<2x32xf32>
    %491 = arith.negf %490 : vector<2x32xf32>
    %492 = math.exp %491 : vector<2x32xf32>
    %cst_124 = arith.constant 1.000000e+00 : f32
    %493 = vector.broadcast %cst_124 : f32 to vector<2x32xf32>
    %494 = arith.addf %493, %492 : vector<2x32xf32>
    %495 = arith.divf %493, %494 : vector<2x32xf32>
    %496 = arith.mulf %487, %433 : vector<2x32xf32>
    %497 = arith.mulf %481, %489 : vector<2x32xf32>
    %498 = arith.addf %496, %497 : vector<2x32xf32>
    %499 = math.tanh %498 : vector<2x32xf32>
    %500 = arith.mulf %495, %499 : vector<2x32xf32>
    %501 = vector.extract_strided_slice %475 {offsets = [0, 0], sizes = [2, 32], strides = [1, 1]} : vector<2x128xf32> to vector<2x32xf32>
    %502 = arith.negf %501 : vector<2x32xf32>
    %503 = math.exp %502 : vector<2x32xf32>
    %cst_125 = arith.constant 1.000000e+00 : f32
    %504 = vector.broadcast %cst_125 : f32 to vector<2x32xf32>
    %505 = arith.addf %504, %503 : vector<2x32xf32>
    %506 = arith.divf %504, %505 : vector<2x32xf32>
    %507 = vector.extract_strided_slice %475 {offsets = [0, 32], sizes = [2, 32], strides = [1, 1]} : vector<2x128xf32> to vector<2x32xf32>
    %508 = arith.negf %507 : vector<2x32xf32>
    %509 = math.exp %508 : vector<2x32xf32>
    %cst_126 = arith.constant 1.000000e+00 : f32
    %510 = vector.broadcast %cst_126 : f32 to vector<2x32xf32>
    %511 = arith.addf %510, %509 : vector<2x32xf32>
    %512 = arith.divf %510, %511 : vector<2x32xf32>
    %513 = vector.extract_strided_slice %475 {offsets = [0, 64], sizes = [2, 32], strides = [1, 1]} : vector<2x128xf32> to vector<2x32xf32>
    %514 = math.tanh %513 : vector<2x32xf32>
    %515 = vector.extract_strided_slice %475 {offsets = [0, 96], sizes = [2, 32], strides = [1, 1]} : vector<2x128xf32> to vector<2x32xf32>
    %516 = arith.negf %515 : vector<2x32xf32>
    %517 = math.exp %516 : vector<2x32xf32>
    %cst_127 = arith.constant 1.000000e+00 : f32
    %518 = vector.broadcast %cst_127 : f32 to vector<2x32xf32>
    %519 = arith.addf %518, %517 : vector<2x32xf32>
    %520 = arith.divf %518, %519 : vector<2x32xf32>
    %521 = arith.mulf %512, %458 : vector<2x32xf32>
    %522 = arith.mulf %506, %514 : vector<2x32xf32>
    %523 = arith.addf %521, %522 : vector<2x32xf32>
    %524 = math.tanh %523 : vector<2x32xf32>
    %525 = arith.mulf %520, %524 : vector<2x32xf32>
    %526 = arith.index_cast %465 : i32 to index
    %c0_128 = arith.constant 0 : index
    %527 = vector.load %arg6[%526, %c0_128] : memref<16x64xf32, #tpu.memory_space<vmem>>, vector<2x32xf32>
    tpu.vector_store %arg6[%526, %c0_128], %500 {strides = array<i32>} : memref<16x64xf32, #tpu.memory_space<vmem>>, vector<2x32xf32>,
    %528 = arith.index_cast %467 : i32 to index
    %c32_129 = arith.constant 32 : index
    %529 = vector.load %arg6[%528, %c32_129] : memref<16x64xf32, #tpu.memory_space<vmem>>, vector<2x32xf32>
    tpu.vector_store %arg6[%528, %c32_129], %525 {strides = array<i32>} : memref<16x64xf32, #tpu.memory_space<vmem>>, vector<2x32xf32>,
    %c8_i32 = arith.constant 8 : i32
    return
  }
  func.func @transform_0(%arg0: i32) -> (i32, i32) {
    %c0_i32 = arith.constant 0 : i32
    %c0_i32_0 = arith.constant 0 : i32
    %c0_i32_1 = arith.constant 0 : i32
    return %c0_i32, %c0_i32_0 : i32, i32
  }
  func.func @transform_1(%arg0: i32) -> (i32, i32) {
    %c0_i32 = arith.constant 0 : i32
    %c0_i32_0 = arith.constant 0 : i32
    %c0_i32_1 = arith.constant 0 : i32
    return %c0_i32, %c0_i32_0 : i32, i32
  }
  func.func @transform_2(%arg0: i32) -> (i32, i32) {
    %c0_i32 = arith.constant 0 : i32
    %c0_i32_0 = arith.constant 0 : i32
    %c0_i32_1 = arith.constant 0 : i32
    return %c0_i32, %c0_i32_0 : i32, i32
  }
  func.func @transform_3(%arg0: i32) -> (i32, i32) {
    %c0_i32 = arith.constant 0 : i32
    %c0_i32_0 = arith.constant 0 : i32
    %c0_i32_1 = arith.constant 0 : i32
    return %c0_i32, %c0_i32_0 : i32, i32
  }
  func.func @transform_4(%arg0: i32) -> (i32, i32) {
    %c0_i32 = arith.constant 0 : i32
    %c0_i32_0 = arith.constant 0 : i32
    %c0_i32_1 = arith.constant 0 : i32
    return %c0_i32, %c0_i32_0 : i32, i32
  }
  func.func @transform_5(%arg0: i32) -> (i32, i32) {
    %c0_i32 = arith.constant 0 : i32
    %c0_i32_0 = arith.constant 0 : i32
    %c0_i32_1 = arith.constant 0 : i32
    return %c0_i32, %c0_i32_0 : i32, i32
  }
}

</mosaic_0001>

<llo_original>
// kernel: tpu_custom_call.1
$region0: #{tpu_custom_call.1}
  #allocation0 [shape = 'u32[]', space=smem, size = 0x4, offset = 0x4, fixed_abs, tag = 'smem constant byte address 0x4 - core index']
  #allocation1 [shape = 'u32[72,128]{1,0:T(1,128)}', space=vmem, size = 0x9000, scoped, tag = 'internal scratch']
  #allocation2 [shape = 'f32[16,256]{1,0:T(8,128)}', space=vmem, size = 0x4000, scoped, tag = 'scratch operand']
  %s0 = inlined_call_operand.hbm [shape: f32[16,16], index: 0, kind: input, shape index: {}]
  %s1 = inlined_call_operand.hbm [shape: f32[16,256], index: 1, kind: input, shape index: {}]
  %s2 = inlined_call_operand.hbm [shape: f32[32,128], index: 2, kind: input, shape index: {}]
  %s3 = inlined_call_operand.hbm [shape: f32[32,128], index: 3, kind: input, shape index: {}]
  %s4 = inlined_call_operand.vmem [shape: f32[1,256], index: 4, kind: input, shape index: {}]
  %s5 = inlined_call_operand.hbm [shape: f32[16,64], index: 5, kind: output, shape index: {}]
  %s6 = sld [smem:[#allocation0]]
  $region46: #{tpu_custom_call.1} parent=0
    _
  %s8 = ssub.s32 1, %s6
  %s9 = scalar_select 0, %s8, %s6
  $region1: #{tpu_custom_call.1} parent=0
    #allocation3 [shape = 'u8[8192]{0}', space=vmem, size = 0x2000, scoped, tag = 'input window, operand 0, single buffered']
    #allocation4 [shape = 's32[1]{0}', space=sflag, size = 0x4, scoped, tag = 'scoped memory for tpu_custom_call.1']
    #allocation5 [shape = 's32[1]{0}', space=sflag, size = 0x4, scoped, tag = 'scoped memory for tpu_custom_call.1']
    #allocation6 [shape = 'u8[16384]{0}', space=vmem, size = 0x4000, scoped, tag = 'input window, operand 1, single buffered']
    #allocation7 [shape = 's32[1]{0}', space=sflag, size = 0x4, scoped, tag = 'scoped memory for tpu_custom_call.1']
    #allocation8 [shape = 'u8[16384]{0}', space=vmem, size = 0x4000, scoped, tag = 'input window, operand 2, single buffered']
    #allocation9 [shape = 'u8[16384]{0}', space=vmem, size = 0x4000, scoped, tag = 'input window, operand 3, single buffered']
    #allocation10 [shape = 's32[1]{0}', space=sflag, size = 0x4, scoped, tag = 'scoped memory for tpu_custom_call.1']
    #allocation11 [shape = 'u8[8192]{0}', space=vmem, size = 0x2000, scoped, tag = 'output window, operand 0, single buffered']
    %10 = vsyncpa [#allocation4], 0
    %11 = vsyncpa [#allocation7], 0
    %12 = vsyncpa [#allocation10], 0
    %13 = vsyncpa [#allocation5], 0
    // Predicated region
    $region2: #{tpu_custom_call.1} parent=1 // pred_check
      _
    $region3: #{tpu_custom_call.1} parent=1 // pred_check_branch
      %15 = sbr.rel (0) target = $region5
    $region4: #{tpu_custom_call.1} parent=1 // pred_region
      %17 = vsyncadd [#allocation4], 0
      %s18 = sshll.u32 %s0, 4
      %s19 = int_to_ptr.hbm [resolvable:$true] %s18
      %s20 = sshll.u32 [#allocation3], 4
      %s21 = int_to_ptr.vmem [resolvable:$true] %s20
      %26 = dma.hbm_to_vmem [thread:$0]  %s19, 256, %s21, [#allocation4], 128, 128, 8
    $region5: #{tpu_custom_call.1} parent=1 // pred_fallthru
      _
    // Predicated region
    $region6: #{tpu_custom_call.1} parent=1 // pred_check
      _
    $region7: #{tpu_custom_call.1} parent=1 // pred_check_branch
      %28 = sbr.rel (0) target = $region9
    $region8: #{tpu_custom_call.1} parent=1 // pred_region
      %30 = vsyncadd [#allocation7], 0
      %s31 = sshll.u32 %s1, 4
      %s32 = int_to_ptr.hbm [resolvable:$true] %s31
      %s33 = sshll.u32 [#allocation6], 4
      %s34 = int_to_ptr.vmem [resolvable:$true] %s33
      %39 = dma.hbm_to_vmem [thread:$0]  %s32, 512, %s34, [#allocation7], 256, 256, 16
    $region9: #{tpu_custom_call.1} parent=1 // pred_fallthru
      _
    // Predicated region
    $region10: #{tpu_custom_call.1} parent=1 // pred_check
      _
    $region11: #{tpu_custom_call.1} parent=1 // pred_check_branch
      %41 = sbr.rel (0) target = $region13
    $region12: #{tpu_custom_call.1} parent=1 // pred_region
      %43 = vsyncadd [#allocation7], 0
      %s44 = sshll.u32 %s2, 4
      %s45 = int_to_ptr.hbm [resolvable:$true] %s44
      %s46 = sshll.u32 [#allocation8], 4
      %s47 = int_to_ptr.vmem [resolvable:$true] %s46
      %52 = dma.hbm_to_vmem [thread:$0]  %s45, 512, %s47, [#allocation7], 128, 128, 8
    $region13: #{tpu_custom_call.1} parent=1 // pred_fallthru
      _
    // Predicated region
    $region14: #{tpu_custom_call.1} parent=1 // pred_check
      _
    $region15: #{tpu_custom_call.1} parent=1 // pred_check_branch
      %54 = sbr.rel (0) target = $region17
    $region16: #{tpu_custom_call.1} parent=1 // pred_region
      %56 = vsyncadd [#allocation10], 0
      %s57 = sshll.u32 %s3, 4
      %s58 = int_to_ptr.hbm [resolvable:$true] %s57
      %s59 = sshll.u32 [#allocation9], 4
      %s60 = int_to_ptr.vmem [resolvable:$true] %s59
      %65 = dma.hbm_to_vmem [thread:$0]  %s58, 512, %s60, [#allocation10], 128, 128, 8
    $region17: #{tpu_custom_call.1} parent=1 // pred_fallthru
      _
    // Predicated region
    $region18: #{tpu_custom_call.1} parent=1 // pred_check
      _
    $region19: #{tpu_custom_call.1} parent=1 // pred_check_branch
      %67 = sbr.rel (0) target = $region21
    $region20: #{tpu_custom_call.1} parent=1 // pred_region
      _
    $region21: #{tpu_custom_call.1} parent=1 // pred_fallthru
      _
    // Predicated region
    $region22: #{tpu_custom_call.1} parent=1 // pred_check
      _
    $region23: #{tpu_custom_call.1} parent=1 // pred_check_branch
      %69 = sbr.rel (0) target = $region25
    $region24: #{tpu_custom_call.1} parent=1 // pred_region
      %71 = dma.done [#allocation4], 256
    $region25: #{tpu_custom_call.1} parent=1 // pred_fallthru
      _
    // Predicated region
    $region26: #{tpu_custom_call.1} parent=1 // pred_check
      _
    $region27: #{tpu_custom_call.1} parent=1 // pred_check_branch
      %73 = sbr.rel (0) target = $region29
    $region28: #{tpu_custom_call.1} parent=1 // pred_region
      %75 = dma.done [#allocation7], 512
    $region29: #{tpu_custom_call.1} parent=1 // pred_fallthru
      _
    // Predicated region
    $region30: #{tpu_custom_call.1} parent=1 // pred_check
      _
    $region31: #{tpu_custom_call.1} parent=1 // pred_check_branch
      %77 = sbr.rel (0) target = $region33
    $region32: #{tpu_custom_call.1} parent=1 // pred_region
      %79 = dma.done [#allocation7], 512
    $region33: #{tpu_custom_call.1} parent=1 // pred_fallthru
      _
    // Predicated region
    $region34: #{tpu_custom_call.1} parent=1 // pred_check
      _
    $region35: #{tpu_custom_call.1} parent=1 // pred_check_branch
      %81 = sbr.rel (0) target = $region37
    $region36: #{tpu_custom_call.1} parent=1 // pred_region
      %83 = dma.done [#allocation10], 512
    $region37: #{tpu_custom_call.1} parent=1 // pred_fallthru
      _
    %v84 = vld [vmem:[#allocation3] sm:$0xff]
    %v85 = vld [vmem:[#allocation3 + $0x8] sm:$0xff]
    %v86 = vld [vmem:[#allocation6] sm:$0xff]
    %v87 = vld [vmem:[#allocation6 + $0x8] sm:$0xff]
    %v88 = vld [vmem:[#allocation6 + $0x10] sm:$0xff]
    %v89 = vld [vmem:[#allocation6 + $0x18] sm:$0xff]
    %v90 = vld [vmem:[%s4] sm:$0x3]
    %v92 = vperm.slane %v90, 0
    %v93 = vperm.slane %v90, 1
    %vm96 = vcmask 130048
    %v98 = vsel %vm96, %v84, 0
    %v101 = vsel %vm96, %v85, 0
    %103 = vmatpush.msra.mxu0 0.0
    %104 = vmatpush.msra.mxu0 0.0
    %105 = vmatpush.msra.mxu0 0.0
    %106 = vmatpush.msra.mxu0 0.0
    %107 = vmatpush.msra.mxu0 0.0
    %108 = vmatpush.msra.mxu0 0.0
    %109 = vmatpush.msra.mxu0 0.0
    %110 = vmatpush.msra.mxu0 0.0
    %111 = vmatpush.msra.mxu0 0.0
    %112 = vmatpush.msra.mxu0 0.0
    %113 = vmatpush.msra.mxu0 0.0
    %114 = vmatpush.msra.mxu0 0.0
    %115 = vmatpush.msra.mxu0 0.0
    %116 = vmatpush.msra.mxu0 0.0
    %117 = vmatpush.msra.mxu0 %v88
    %118 = vmatpush.msra.mxu0 %v86
    %119 = vmatmul.f32.gmra.mxu0 %v98
    %v120 = vpop.f32.mrf.mxu0
    %v121 = vadd.f32 %v92, %v120
    %122 = vmatmul.f32.gmra.mxu0 %v101
    %v123 = vpop.f32.mrf.mxu0
    %v124 = vadd.f32 %v92, %v123
    %125 = vdwg.mxu0
    %126 = vmatpush.msra.mxu0 0.0
    %127 = vmatpush.msra.mxu0 0.0
    %128 = vmatpush.msra.mxu0 0.0
    %129 = vmatpush.msra.mxu0 0.0
    %130 = vmatpush.msra.mxu0 0.0
    %131 = vmatpush.msra.mxu0 0.0
    %132 = vmatpush.msra.mxu0 0.0
    %133 = vmatpush.msra.mxu0 0.0
    %134 = vmatpush.msra.mxu0 0.0
    %135 = vmatpush.msra.mxu0 0.0
    %136 = vmatpush.msra.mxu0 0.0
    %137 = vmatpush.msra.mxu0 0.0
    %138 = vmatpush.msra.mxu0 0.0
    %139 = vmatpush.msra.mxu0 0.0
    %140 = vmatpush.msra.mxu0 %v89
    %141 = vmatpush.msra.mxu0 %v87
    %142 = vmatmul.f32.gmra.mxu0 %v98
    %v143 = vpop.f32.mrf.mxu0
    %v144 = vadd.f32 %v93, %v143
    %145 = vmatmul.f32.gmra.mxu0 %v101
    %v146 = vpop.f32.mrf.mxu0
    %v147 = vadd.f32 %v93, %v146
    %148 = vdwg.mxu0
    %149 = vst [vmem:[#allocation2] sm:$0xff] %v121
    %150 = vst [vmem:[#allocation2 + $0x8] sm:$0xff] %v144
    %151 = vst [vmem:[#allocation2 + $0x10] sm:$0xff] %v124
    %152 = vst [vmem:[#allocation2 + $0x18] sm:$0xff] %v147
    %v153 = vld [vmem:[#allocation8] sm:$0xff]
    %v154 = vld [vmem:[#allocation8 + $0x8] sm:$0xff]
    %v155 = vld [vmem:[#allocation8 + $0x10] sm:$0xff]
    %v156 = vld [vmem:[#allocation8 + $0x18] sm:$0xff]
    %v157 = vld [vmem:[#allocation9] sm:$0xff]
    %v158 = vld [vmem:[#allocation9 + $0x8] sm:$0xff]
    %v159 = vld [vmem:[#allocation9 + $0x10] sm:$0xff]
    %v160 = vld [vmem:[#allocation9 + $0x18] sm:$0xff]
    %v161 = vld [vmem:[#allocation2] sm:$0x3]
    %vm162 = vcmask 261120
    %v164 = vsel %vm162, 0.0, 0
    %166 = vmatpush.msra.mxu0 0.0
    %167 = vmatpush.msra.mxu0 0.0
    %168 = vmatpush.msra.mxu0 0.0
    %169 = vmatpush.msra.mxu0 0.0
    %170 = vmatpush.msra.mxu0 0.0
    %171 = vmatpush.msra.mxu0 0.0
    %172 = vmatpush.msra.mxu0 0.0
    %173 = vmatpush.msra.mxu0 0.0
    %174 = vmatpush.msra.mxu0 0.0
    %175 = vmatpush.msra.mxu0 0.0
    %176 = vmatpush.msra.mxu0 0.0
    %177 = vmatpush.msra.mxu0 0.0
    %178 = vmatpush.msra.mxu0 %v156
    %179 = vmatpush.msra.mxu0 %v155
    %180 = vmatpush.msra.mxu0 %v154
    %181 = vmatpush.msra.mxu0 %v153
    %182 = vmatmul.f32.gmra.mxu0 %v164
    %v183 = vpop.f32.mrf.mxu0
    %v184 = vadd.f32 0.0, %v183
    %185 = vdwg.mxu0
    %v186 = vadd.f32 %v161, %v184
    %v187 = vld [vmem:[#allocation2 + $0x18] sm:$0xc0]
    %188 = vmatpush.msra.mxu0 0.0
    %189 = vmatpush.msra.mxu0 0.0
    %190 = vmatpush.msra.mxu0 0.0
    %191 = vmatpush.msra.mxu0 0.0
    %192 = vmatpush.msra.mxu0 0.0
    %193 = vmatpush.msra.mxu0 0.0
    %194 = vmatpush.msra.mxu0 0.0
    %195 = vmatpush.msra.mxu0 0.0
    %196 = vmatpush.msra.mxu0 0.0
    %197 = vmatpush.msra.mxu0 0.0
    %198 = vmatpush.msra.mxu0 0.0
    %199 = vmatpush.msra.mxu0 0.0
    %200 = vmatpush.msra.mxu0 %v160
    %201 = vmatpush.msra.mxu0 %v159
    %202 = vmatpush.msra.mxu0 %v158
    %203 = vmatpush.msra.mxu0 %v157
    %204 = vmatmul.f32.gmra.mxu0 %v164
    %v205 = vpop.f32.mrf.mxu0
    %v206 = vadd.f32 0.0, %v205
    %207 = vdwg.mxu0
    %v209 = vrot.slane %v206, 2
    %v211 = vadd.f32 %v187, %v209
    %v212 = vxor.u32 %v186, 2147483648
    %v213 = vmul.f32 %v212, 1.442695
    %v214 = vpow.pop %v213
    %v215 = vadd.f32 %v214, 1.0
    %v216 = vrcp.pop %v215
    %v217 = vmul.f32 %v215, %v216
    %v218 = vsub.f32 1.0, %v217
    %v219 = vmul.f32 %v216, %v218
    %v220 = vadd.f32 %v216, %v219
    %vm221 = vweird.f32 %v215
    %vm222 = vweird.f32 %v216
    %vm223 = vmor %vm221, %vm222
    %v224 = vsel %vm223, %v216, %v220
    %v225 = vand.u32 2147483647, %v215
    %vm226 = vcmp.eq.f32.partialorder %v225, 8.507059e+37
    %v227 = vand.u32 %v215, 2147483648
    %v228 = vor.u32 1.1754944e-38, %v227
    %v229 = vsel %vm226, %v228, %v224
    %v230 = vmul.f32 1.0, %v229
    %v231 = vtanh.pop %v186
    %v232 = vmul.f32 %v230, 0.0
    %234 = vrot.lane.b32.xlu0 %v231, 64
    %v235 = vpop.permute.xlu0 %234
    %v237 = vmul.f32 %v230, %v235
    %239 = vrot.lane.b32.xlu0 %v237, 32
    %v240 = vpop.permute.xlu0 %239
    %v242 = vadd.f32 %v232, %v240
    %v243 = vtanh.pop %v242
    %245 = vrot.lane.b32.xlu0 %v243, 64
    %v246 = vpop.permute.xlu0 %245
    %v248 = vmul.f32 %v230, %v246
    %v249 = vxor.u32 %v211, 2147483648
    %v250 = vmul.f32 %v249, 1.442695
    %v251 = vpow.pop %v250
    %v252 = vadd.f32 %v251, 1.0
    %v253 = vrcp.pop %v252
    %v254 = vmul.f32 %v252, %v253
    %v255 = vsub.f32 1.0, %v254
    %v256 = vmul.f32 %v253, %v255
    %v257 = vadd.f32 %v253, %v256
    %vm258 = vweird.f32 %v252
    %vm259 = vweird.f32 %v253
    %vm260 = vmor %vm258, %vm259
    %v261 = vsel %vm260, %v253, %v257
    %v262 = vand.u32 2147483647, %v252
    %vm263 = vcmp.eq.f32.partialorder %v262, 8.507059e+37
    %v264 = vand.u32 %v252, 2147483648
    %v265 = vor.u32 1.1754944e-38, %v264
    %v266 = vsel %vm263, %v265, %v261
    %v267 = vmul.f32 1.0, %v266
    %v268 = vtanh.pop %v211
    %v269 = vmul.f32 %v267, 0.0
    %271 = vrot.lane.b32.xlu0 %v268, 64
    %v272 = vpop.permute.xlu0 %271
    %v274 = vmul.f32 %v267, %v272
    %276 = vrot.lane.b32.xlu0 %v274, 32
    %v277 = vpop.permute.xlu0 %276
    %v279 = vadd.f32 %v269, %v277
    %v280 = vtanh.pop %v279
    %282 = vrot.lane.b32.xlu0 %v280, 64
    %v283 = vpop.permute.xlu0 %282
    %v285 = vmul.f32 %v267, %v283
    %287 = vrot.lane.b32.xlu0 %v248, 32
    %v288 = vpop.permute.xlu0 %287
    %vm290 = vcmask 254976
    %291 = vst.msk [vmem:[#allocation11] sm:$0x3] %vm290, %v288
    %293 = vrot.lane.b32.xlu0 %v285, 64
    %v294 = vpop.permute.xlu0 %293
    %vm296 = vcmask 523526
    %297 = vst.msk [vmem:[#allocation11 + $0x8] sm:$0xc0] %vm296, %v294
    %v298 = vld [vmem:[#allocation2] sm:$0xc]
    %v299 = vsel %vm162, %v288, 0
    %301 = vmatpush.msra.mxu0 0.0
    %302 = vmatpush.msra.mxu0 0.0
    %303 = vmatpush.msra.mxu0 0.0
    %304 = vmatpush.msra.mxu0 0.0
    %305 = vmatpush.msra.mxu0 0.0
    %306 = vmatpush.msra.mxu0 0.0
    %307 = vmatpush.msra.mxu0 0.0
    %308 = vmatpush.msra.mxu0 0.0
    %309 = vmatpush.msra.mxu0 0.0
    %310 = vmatpush.msra.mxu0 0.0
    %311 = vmatpush.msra.mxu0 0.0
    %312 = vmatpush.msra.mxu0 0.0
    %313 = vmatpush.msra.mxu0 %v156
    %314 = vmatpush.msra.mxu0 %v155
    %315 = vmatpush.msra.mxu0 %v154
    %316 = vmatpush.msra.mxu0 %v153
    %317 = vmatmul.f32.gmra.mxu0 %v299
    %v318 = vpop.f32.mrf.mxu0
    %v319 = vadd.f32 0.0, %v318
    %320 = vdwg.mxu0
    %v322 = vrot.slane %v319, 6
    %v324 = vadd.f32 %v298, %v322
    %v325 = vld [vmem:[#allocation2 + $0x18] sm:$0x30]
    %v326 = vrot.slane %v285, 6
    %327 = vrot.lane.b32.xlu0 %v326, 32
    %v328 = vpop.permute.xlu0 %327
    %v329 = vsel %vm162, %v328, 0
    %331 = vmatpush.msra.mxu0 0.0
    %332 = vmatpush.msra.mxu0 0.0
    %333 = vmatpush.msra.mxu0 0.0
    %334 = vmatpush.msra.mxu0 0.0
    %335 = vmatpush.msra.mxu0 0.0
    %336 = vmatpush.msra.mxu0 0.0
    %337 = vmatpush.msra.mxu0 0.0
    %338 = vmatpush.msra.mxu0 0.0
    %339 = vmatpush.msra.mxu0 0.0
    %340 = vmatpush.msra.mxu0 0.0
    %341 = vmatpush.msra.mxu0 0.0
    %342 = vmatpush.msra.mxu0 0.0
    %343 = vmatpush.msra.mxu0 %v160
    %344 = vmatpush.msra.mxu0 %v159
    %345 = vmatpush.msra.mxu0 %v158
    %346 = vmatpush.msra.mxu0 %v157
    %347 = vmatmul.f32.gmra.mxu0 %v329
    %v348 = vpop.f32.mrf.mxu0
    %v349 = vadd.f32 0.0, %v348
    %350 = vdwg.mxu0
    %v352 = vrot.slane %v349, 4
    %v354 = vadd.f32 %v325, %v352
    %v355 = vxor.u32 %v324, 2147483648
    %v356 = vmul.f32 %v355, 1.442695
    %v357 = vpow.pop %v356
    %v358 = vadd.f32 %v357, 1.0
    %v359 = vrcp.pop %v358
    %v360 = vmul.f32 %v358, %v359
    %v361 = vsub.f32 1.0, %v360
    %v362 = vmul.f32 %v359, %v361
    %v363 = vadd.f32 %v359, %v362
    %vm364 = vweird.f32 %v358
    %vm365 = vweird.f32 %v359
    %vm366 = vmor %vm364, %vm365
    %v367 = vsel %vm366, %v359, %v363
    %v368 = vand.u32 2147483647, %v358
    %vm369 = vcmp.eq.f32.partialorder %v368, 8.507059e+37
    %v370 = vand.u32 %v358, 2147483648
    %v371 = vor.u32 1.1754944e-38, %v370
    %v372 = vsel %vm369, %v371, %v367
    %v373 = vmul.f32 1.0, %v372
    %v374 = vtanh.pop %v324
    %v376 = vrot.slane %v242, 6
    %v378 = vmul.f32 %v373, %v376
    %380 = vrot.lane.b32.xlu0 %v374, 64
    %v381 = vpop.permute.xlu0 %380
    %v383 = vmul.f32 %v373, %v381
    %385 = vrot.lane.b32.xlu0 %v383, 32
    %v386 = vpop.permute.xlu0 %385
    %v388 = vadd.f32 %v378, %v386
    %v389 = vtanh.pop %v388
    %391 = vrot.lane.b32.xlu0 %v389, 64
    %v392 = vpop.permute.xlu0 %391
    %v394 = vmul.f32 %v373, %v392
    %v395 = vxor.u32 %v354, 2147483648
    %v396 = vmul.f32 %v395, 1.442695
    %v397 = vpow.pop %v396
    %v398 = vadd.f32 %v397, 1.0
    %v399 = vrcp.pop %v398
    %v400 = vmul.f32 %v398, %v399
    %v401 = vsub.f32 1.0, %v400
    %v402 = vmul.f32 %v399, %v401
    %v403 = vadd.f32 %v399, %v402
    %vm404 = vweird.f32 %v398
    %vm405 = vweird.f32 %v399
    %vm406 = vmor %vm404, %vm405
    %v407 = vsel %vm406, %v399, %v403
    %v408 = vand.u32 2147483647, %v398
    %vm409 = vcmp.eq.f32.partialorder %v408, 8.507059e+37
    %v410 = vand.u32 %v398, 2147483648
    %v411 = vor.u32 1.1754944e-38, %v410
    %v412 = vsel %vm409, %v411, %v407
    %v413 = vmul.f32 1.0, %v412
    %v414 = vtanh.pop %v354
    %v416 = vrot.slane %v279, 2
    %v418 = vmul.f32 %v413, %v416
    %420 = vrot.lane.b32.xlu0 %v414, 64
    %v421 = vpop.permute.xlu0 %420
    %v423 = vmul.f32 %v413, %v421
    %425 = vrot.lane.b32.xlu0 %v423, 32
    %v426 = vpop.permute.xlu0 %425
    %v428 = vadd.f32 %v418, %v426
    %v429 = vtanh.pop %v428
    %431 = vrot.lane.b32.xlu0 %v429, 64
    %v432 = vpop.permute.xlu0 %431
    %v434 = vmul.f32 %v413, %v432
    %436 = vrot.lane.b32.xlu0 %v394, 32
    %v437 = vpop.permute.xlu0 %436
    %vm439 = vcmask 257026
    %440 = vst.msk [vmem:[#allocation11] sm:$0xc] %vm439, %v437
    %442 = vrot.lane.b32.xlu0 %v434, 64
    %v443 = vpop.permute.xlu0 %442
    %vm445 = vcmask 521476
    %446 = vst.msk [vmem:[#allocation11 + $0x8] sm:$0x30] %vm445, %v443
    %v447 = vld [vmem:[#allocation2] sm:$0x30]
    %v448 = vrot.slane %v394, 2
    %449 = vrot.lane.b32.xlu0 %v448, 32
    %v450 = vpop.permute.xlu0 %449
    %v451 = vsel %vm162, %v450, 0
    %453 = vmatpush.msra.mxu0 0.0
    %454 = vmatpush.msra.mxu0 0.0
    %455 = vmatpush.msra.mxu0 0.0
    %456 = vmatpush.msra.mxu0 0.0
    %457 = vmatpush.msra.mxu0 0.0
    %458 = vmatpush.msra.mxu0 0.0
    %459 = vmatpush.msra.mxu0 0.0
    %460 = vmatpush.msra.mxu0 0.0
    %461 = vmatpush.msra.mxu0 0.0
    %462 = vmatpush.msra.mxu0 0.0
    %463 = vmatpush.msra.mxu0 0.0
    %464 = vmatpush.msra.mxu0 0.0
    %465 = vmatpush.msra.mxu0 %v156
    %466 = vmatpush.msra.mxu0 %v155
    %467 = vmatpush.msra.mxu0 %v154
    %468 = vmatpush.msra.mxu0 %v153
    %469 = vmatmul.f32.gmra.mxu0 %v451
    %v470 = vpop.f32.mrf.mxu0
    %v471 = vadd.f32 0.0, %v470
    %472 = vdwg.mxu0
    %v474 = vrot.slane %v471, 4
    %v476 = vadd.f32 %v447, %v474
    %v477 = vld [vmem:[#allocation2 + $0x18] sm:$0xc]
    %v478 = vrot.slane %v434, 4
    %479 = vrot.lane.b32.xlu0 %v478, 32
    %v480 = vpop.permute.xlu0 %479
    %v481 = vsel %vm162, %v480, 0
    %483 = vmatpush.msra.mxu0 0.0
    %484 = vmatpush.msra.mxu0 0.0
    %485 = vmatpush.msra.mxu0 0.0
    %486 = vmatpush.msra.mxu0 0.0
    %487 = vmatpush.msra.mxu0 0.0
    %488 = vmatpush.msra.mxu0 0.0
    %489 = vmatpush.msra.mxu0 0.0
    %490 = vmatpush.msra.mxu0 0.0
    %491 = vmatpush.msra.mxu0 0.0
    %492 = vmatpush.msra.mxu0 0.0
    %493 = vmatpush.msra.mxu0 0.0
    %494 = vmatpush.msra.mxu0 0.0
    %495 = vmatpush.msra.mxu0 %v160
    %496 = vmatpush.msra.mxu0 %v159
    %497 = vmatpush.msra.mxu0 %v158
    %498 = vmatpush.msra.mxu0 %v157
    %499 = vmatmul.f32.gmra.mxu0 %v481
    %v500 = vpop.f32.mrf.mxu0
    %v501 = vadd.f32 0.0, %v500
    %502 = vdwg.mxu0
    %v504 = vrot.slane %v501, 6
    %v506 = vadd.f32 %v477, %v504
    %v507 = vxor.u32 %v476, 2147483648
    %v508 = vmul.f32 %v507, 1.442695
    %v509 = vpow.pop %v508
    %v510 = vadd.f32 %v509, 1.0
    %v511 = vrcp.pop %v510
    %v512 = vmul.f32 %v510, %v511
    %v513 = vsub.f32 1.0, %v512
    %v514 = vmul.f32 %v511, %v513
    %v515 = vadd.f32 %v511, %v514
    %vm516 = vweird.f32 %v510
    %vm517 = vweird.f32 %v511
    %vm518 = vmor %vm516, %vm517
    %v519 = vsel %vm518, %v511, %v515
    %v520 = vand.u32 2147483647, %v510
    %vm521 = vcmp.eq.f32.partialorder %v520, 8.507059e+37
    %v522 = vand.u32 %v510, 2147483648
    %v523 = vor.u32 1.1754944e-38, %v522
    %v524 = vsel %vm521, %v523, %v519
    %v525 = vmul.f32 1.0, %v524
    %v526 = vtanh.pop %v476
    %v528 = vrot.slane %v388, 6
    %v530 = vmul.f32 %v525, %v528
    %532 = vrot.lane.b32.xlu0 %v526, 64
    %v533 = vpop.permute.xlu0 %532
    %v535 = vmul.f32 %v525, %v533
    %537 = vrot.lane.b32.xlu0 %v535, 32
    %v538 = vpop.permute.xlu0 %537
    %v540 = vadd.f32 %v530, %v538
    %v541 = vtanh.pop %v540
    %543 = vrot.lane.b32.xlu0 %v541, 64
    %v544 = vpop.permute.xlu0 %543
    %v546 = vmul.f32 %v525, %v544
    %v547 = vxor.u32 %v506, 2147483648
    %v548 = vmul.f32 %v547, 1.442695
    %v549 = vpow.pop %v548
    %v550 = vadd.f32 %v549, 1.0
    %v551 = vrcp.pop %v550
    %v552 = vmul.f32 %v550, %v551
    %v553 = vsub.f32 1.0, %v552
    %v554 = vmul.f32 %v551, %v553
    %v555 = vadd.f32 %v551, %v554
    %vm556 = vweird.f32 %v550
    %vm557 = vweird.f32 %v551
    %vm558 = vmor %vm556, %vm557
    %v559 = vsel %vm558, %v551, %v555
    %v560 = vand.u32 2147483647, %v550
    %vm561 = vcmp.eq.f32.partialorder %v560, 8.507059e+37
    %v562 = vand.u32 %v550, 2147483648
    %v563 = vor.u32 1.1754944e-38, %v562
    %v564 = vsel %vm561, %v563, %v559
    %v565 = vmul.f32 1.0, %v564
    %v566 = vtanh.pop %v506
    %v568 = vrot.slane %v428, 2
    %v570 = vmul.f32 %v565, %v568
    %572 = vrot.lane.b32.xlu0 %v566, 64
    %v573 = vpop.permute.xlu0 %572
    %v575 = vmul.f32 %v565, %v573
    %577 = vrot.lane.b32.xlu0 %v575, 32
    %v578 = vpop.permute.xlu0 %577
    %v580 = vadd.f32 %v570, %v578
    %v581 = vtanh.pop %v580
    %583 = vrot.lane.b32.xlu0 %v581, 64
    %v584 = vpop.permute.xlu0 %583
    %v586 = vmul.f32 %v565, %v584
    %588 = vrot.lane.b32.xlu0 %v546, 32
    %v589 = vpop.permute.xlu0 %588
    %vm591 = vcmask 259076
    %592 = vst.msk [vmem:[#allocation11] sm:$0x30] %vm591, %v589
    %594 = vrot.lane.b32.xlu0 %v586, 64
    %v595 = vpop.permute.xlu0 %594
    %vm597 = vcmask 519426
    %598 = vst.msk [vmem:[#allocation11 + $0x8] sm:$0xc] %vm597, %v595
    %v599 = vld [vmem:[#allocation2] sm:$0xc0]
    %v600 = vrot.slane %v546, 4
    %601 = vrot.lane.b32.xlu0 %v600, 32
    %v602 = vpop.permute.xlu0 %601
    %v603 = vsel %vm162, %v602, 0
    %605 = vmatpush.msra.mxu0 0.0
    %606 = vmatpush.msra.mxu0 0.0
    %607 = vmatpush.msra.mxu0 0.0
    %608 = vmatpush.msra.mxu0 0.0
    %609 = vmatpush.msra.mxu0 0.0
    %610 = vmatpush.msra.mxu0 0.0
    %611 = vmatpush.msra.mxu0 0.0
    %612 = vmatpush.msra.mxu0 0.0
    %613 = vmatpush.msra.mxu0 0.0
    %614 = vmatpush.msra.mxu0 0.0
    %615 = vmatpush.msra.mxu0 0.0
    %616 = vmatpush.msra.mxu0 0.0
    %617 = vmatpush.msra.mxu0 %v156
    %618 = vmatpush.msra.mxu0 %v155
    %619 = vmatpush.msra.mxu0 %v154
    %620 = vmatpush.msra.mxu0 %v153
    %621 = vmatmul.f32.gmra.mxu0 %v603
    %v622 = vpop.f32.mrf.mxu0
    %v623 = vadd.f32 0.0, %v622
    %624 = vdwg.mxu0
    %v626 = vrot.slane %v623, 2
    %v628 = vadd.f32 %v599, %v626
    %v629 = vld [vmem:[#allocation2 + $0x18] sm:$0x3]
    %v630 = vrot.slane %v586, 2
    %631 = vrot.lane.b32.xlu0 %v630, 32
    %v632 = vpop.permute.xlu0 %631
    %v633 = vsel %vm162, %v632, 0
    %635 = vmatpush.msra.mxu0 0.0
    %636 = vmatpush.msra.mxu0 0.0
    %637 = vmatpush.msra.mxu0 0.0
    %638 = vmatpush.msra.mxu0 0.0
    %639 = vmatpush.msra.mxu0 0.0
    %640 = vmatpush.msra.mxu0 0.0
    %641 = vmatpush.msra.mxu0 0.0
    %642 = vmatpush.msra.mxu0 0.0
    %643 = vmatpush.msra.mxu0 0.0
    %644 = vmatpush.msra.mxu0 0.0
    %645 = vmatpush.msra.mxu0 0.0
    %646 = vmatpush.msra.mxu0 0.0
    %647 = vmatpush.msra.mxu0 %v160
    %648 = vmatpush.msra.mxu0 %v159
    %649 = vmatpush.msra.mxu0 %v158
    %650 = vmatpush.msra.mxu0 %v157
    %651 = vmatmul.f32.gmra.mxu0 %v633
    %v652 = vpop.f32.mrf.mxu0
    %v653 = vadd.f32 0.0, %v652
    %654 = vdwg.mxu0
    %v655 = vadd.f32 %v629, %v653
    %v656 = vxor.u32 %v628, 2147483648
    %v657 = vmul.f32 %v656, 1.442695
    %v658 = vpow.pop %v657
    %v659 = vadd.f32 %v658, 1.0
    %v660 = vrcp.pop %v659
    %v661 = vmul.f32 %v659, %v660
    %v662 = vsub.f32 1.0, %v661
    %v663 = vmul.f32 %v660, %v662
    %v664 = vadd.f32 %v660, %v663
    %vm665 = vweird.f32 %v659
    %vm666 = vweird.f32 %v660
    %vm667 = vmor %vm665, %vm666
    %v668 = vsel %vm667, %v660, %v664
    %v669 = vand.u32 2147483647, %v659
    %vm670 = vcmp.eq.f32.partialorder %v669, 8.507059e+37
    %v671 = vand.u32 %v659, 2147483648
    %v672 = vor.u32 1.1754944e-38, %v671
    %v673 = vsel %vm670, %v672, %v668
    %v674 = vmul.f32 1.0, %v673
    %v675 = vtanh.pop %v628
    %v677 = vrot.slane %v540, 6
    %v679 = vmul.f32 %v674, %v677
    %681 = vrot.lane.b32.xlu0 %v675, 64
    %v682 = vpop.permute.xlu0 %681
    %v684 = vmul.f32 %v674, %v682
    %686 = vrot.lane.b32.xlu0 %v684, 32
    %v687 = vpop.permute.xlu0 %686
    %v689 = vadd.f32 %v679, %v687
    %v690 = vtanh.pop %v689
    %692 = vrot.lane.b32.xlu0 %v690, 64
    %v693 = vpop.permute.xlu0 %692
    %v695 = vmul.f32 %v674, %v693
    %v696 = vxor.u32 %v655, 2147483648
    %v697 = vmul.f32 %v696, 1.442695
    %v698 = vpow.pop %v697
    %v699 = vadd.f32 %v698, 1.0
    %v700 = vrcp.pop %v699
    %v701 = vmul.f32 %v699, %v700
    %v702 = vsub.f32 1.0, %v701
    %v703 = vmul.f32 %v700, %v702
    %v704 = vadd.f32 %v700, %v703
    %vm705 = vweird.f32 %v699
    %vm706 = vweird.f32 %v700
    %vm707 = vmor %vm705, %vm706
    %v708 = vsel %vm707, %v700, %v704
    %v709 = vand.u32 2147483647, %v699
    %vm710 = vcmp.eq.f32.partialorder %v709, 8.507059e+37
    %v711 = vand.u32 %v699, 2147483648
    %v712 = vor.u32 1.1754944e-38, %v711
    %v713 = vsel %vm710, %v712, %v708
    %v714 = vmul.f32 1.0, %v713
    %v715 = vtanh.pop %v655
    %v717 = vrot.slane %v580, 2
    %v719 = vmul.f32 %v714, %v717
    %721 = vrot.lane.b32.xlu0 %v715, 64
    %v722 = vpop.permute.xlu0 %721
    %v724 = vmul.f32 %v714, %v722
    %726 = vrot.lane.b32.xlu0 %v724, 32
    %v727 = vpop.permute.xlu0 %726
    %v729 = vadd.f32 %v719, %v727
    %v730 = vtanh.pop %v729
    %732 = vrot.lane.b32.xlu0 %v730, 64
    %v733 = vpop.permute.xlu0 %732
    %v735 = vmul.f32 %v714, %v733
    %737 = vrot.lane.b32.xlu0 %v695, 32
    %v738 = vpop.permute.xlu0 %737
    %vm740 = vcmask 261126
    %741 = vst.msk [vmem:[#allocation11] sm:$0xc0] %vm740, %v738
    %743 = vrot.lane.b32.xlu0 %v735, 64
    %v744 = vpop.permute.xlu0 %743
    %vm746 = vcmask 517376
    %747 = vst.msk [vmem:[#allocation11 + $0x8] sm:$0x3] %vm746, %v744
    %v748 = vld [vmem:[#allocation2 + $0x10] sm:$0x3]
    %v749 = vrot.slane %v695, 6
    %750 = vrot.lane.b32.xlu0 %v749, 32
    %v751 = vpop.permute.xlu0 %750
    %v752 = vsel %vm162, %v751, 0
    %754 = vmatpush.msra.mxu0 0.0
    %755 = vmatpush.msra.mxu0 0.0
    %756 = vmatpush.msra.mxu0 0.0
    %757 = vmatpush.msra.mxu0 0.0
    %758 = vmatpush.msra.mxu0 0.0
    %759 = vmatpush.msra.mxu0 0.0
    %760 = vmatpush.msra.mxu0 0.0
    %761 = vmatpush.msra.mxu0 0.0
    %762 = vmatpush.msra.mxu0 0.0
    %763 = vmatpush.msra.mxu0 0.0
    %764 = vmatpush.msra.mxu0 0.0
    %765 = vmatpush.msra.mxu0 0.0
    %766 = vmatpush.msra.mxu0 %v156
    %767 = vmatpush.msra.mxu0 %v155
    %768 = vmatpush.msra.mxu0 %v154
    %769 = vmatpush.msra.mxu0 %v153
    %770 = vmatmul.f32.gmra.mxu0 %v752
    %v771 = vpop.f32.mrf.mxu0
    %v772 = vadd.f32 0.0, %v771
    %773 = vdwg.mxu0
    %v774 = vadd.f32 %v748, %v772
    %v775 = vld [vmem:[#allocation2 + $0x8] sm:$0xc0]
    %776 = vrot.lane.b32.xlu0 %v735, 32
    %v777 = vpop.permute.xlu0 %776
    %v778 = vsel %vm162, %v777, 0
    %780 = vmatpush.msra.mxu0 0.0
    %781 = vmatpush.msra.mxu0 0.0
    %782 = vmatpush.msra.mxu0 0.0
    %783 = vmatpush.msra.mxu0 0.0
    %784 = vmatpush.msra.mxu0 0.0
    %785 = vmatpush.msra.mxu0 0.0
    %786 = vmatpush.msra.mxu0 0.0
    %787 = vmatpush.msra.mxu0 0.0
    %788 = vmatpush.msra.mxu0 0.0
    %789 = vmatpush.msra.mxu0 0.0
    %790 = vmatpush.msra.mxu0 0.0
    %791 = vmatpush.msra.mxu0 0.0
    %792 = vmatpush.msra.mxu0 %v160
    %793 = vmatpush.msra.mxu0 %v159
    %794 = vmatpush.msra.mxu0 %v158
    %795 = vmatpush.msra.mxu0 %v157
    %796 = vmatmul.f32.gmra.mxu0 %v778
    %v797 = vpop.f32.mrf.mxu0
    %v798 = vadd.f32 0.0, %v797
    %799 = vdwg.mxu0
    %v801 = vrot.slane %v798, 2
    %v803 = vadd.f32 %v775, %v801
    %v804 = vxor.u32 %v774, 2147483648
    %v805 = vmul.f32 %v804, 1.442695
    %v806 = vpow.pop %v805
    %v807 = vadd.f32 %v806, 1.0
    %v808 = vrcp.pop %v807
    %v809 = vmul.f32 %v807, %v808
    %v810 = vsub.f32 1.0, %v809
    %v811 = vmul.f32 %v808, %v810
    %v812 = vadd.f32 %v808, %v811
    %vm813 = vweird.f32 %v807
    %vm814 = vweird.f32 %v808
    %vm815 = vmor %vm813, %vm814
    %v816 = vsel %vm815, %v808, %v812
    %v817 = vand.u32 2147483647, %v807
    %vm818 = vcmp.eq.f32.partialorder %v817, 8.507059e+37
    %v819 = vand.u32 %v807, 2147483648
    %v820 = vor.u32 1.1754944e-38, %v819
    %v821 = vsel %vm818, %v820, %v816
    %v822 = vmul.f32 1.0, %v821
    %v823 = vtanh.pop %v774
    %v825 = vrot.slane %v689, 6
    %v827 = vmul.f32 %v822, %v825
    %829 = vrot.lane.b32.xlu0 %v823, 64
    %v830 = vpop.permute.xlu0 %829
    %v832 = vmul.f32 %v822, %v830
    %834 = vrot.lane.b32.xlu0 %v832, 32
    %v835 = vpop.permute.xlu0 %834
    %v837 = vadd.f32 %v827, %v835
    %v838 = vtanh.pop %v837
    %840 = vrot.lane.b32.xlu0 %v838, 64
    %v841 = vpop.permute.xlu0 %840
    %v843 = vmul.f32 %v822, %v841
    %v844 = vxor.u32 %v803, 2147483648
    %v845 = vmul.f32 %v844, 1.442695
    %v846 = vpow.pop %v845
    %v847 = vadd.f32 %v846, 1.0
    %v848 = vrcp.pop %v847
    %v849 = vmul.f32 %v847, %v848
    %v850 = vsub.f32 1.0, %v849
    %v851 = vmul.f32 %v848, %v850
    %v852 = vadd.f32 %v848, %v851
    %vm853 = vweird.f32 %v847
    %vm854 = vweird.f32 %v848
    %vm855 = vmor %vm853, %vm854
    %v856 = vsel %vm855, %v848, %v852
    %v857 = vand.u32 2147483647, %v847
    %vm858 = vcmp.eq.f32.partialorder %v857, 8.507059e+37
    %v859 = vand.u32 %v847, 2147483648
    %v860 = vor.u32 1.1754944e-38, %v859
    %v861 = vsel %vm858, %v860, %v856
    %v862 = vmul.f32 1.0, %v861
    %v863 = vtanh.pop %v803
    %v865 = vrot.slane %v729, 2
    %v867 = vmul.f32 %v862, %v865
    %869 = vrot.lane.b32.xlu0 %v863, 64
    %v870 = vpop.permute.xlu0 %869
    %v872 = vmul.f32 %v862, %v870
    %874 = vrot.lane.b32.xlu0 %v872, 32
    %v875 = vpop.permute.xlu0 %874
    %v877 = vadd.f32 %v867, %v875
    %v878 = vtanh.pop %v877
    %880 = vrot.lane.b32.xlu0 %v878, 64
    %v881 = vpop.permute.xlu0 %880
    %v883 = vmul.f32 %v862, %v881
    %885 = vrot.lane.b32.xlu0 %v843, 32
    %v886 = vpop.permute.xlu0 %885
    %888 = vst.msk [vmem:[#allocation11 + $0x8] sm:$0x3] %vm290, %v886
    %890 = vrot.lane.b32.xlu0 %v883, 64
    %v891 = vpop.permute.xlu0 %890
    %893 = vst.msk [vmem:[#allocation11] sm:$0xc0] %vm296, %v891
    %v894 = vld [vmem:[#allocation2 + $0x10] sm:$0xc]
    %v895 = vsel %vm162, %v886, 0
    %897 = vmatpush.msra.mxu0 0.0
    %898 = vmatpush.msra.mxu0 0.0
    %899 = vmatpush.msra.mxu0 0.0
    %900 = vmatpush.msra.mxu0 0.0
    %901 = vmatpush.msra.mxu0 0.0
    %902 = vmatpush.msra.mxu0 0.0
    %903 = vmatpush.msra.mxu0 0.0
    %904 = vmatpush.msra.mxu0 0.0
    %905 = vmatpush.msra.mxu0 0.0
    %906 = vmatpush.msra.mxu0 0.0
    %907 = vmatpush.msra.mxu0 0.0
    %908 = vmatpush.msra.mxu0 0.0
    %909 = vmatpush.msra.mxu0 %v156
    %910 = vmatpush.msra.mxu0 %v155
    %911 = vmatpush.msra.mxu0 %v154
    %912 = vmatpush.msra.mxu0 %v153
    %913 = vmatmul.f32.gmra.mxu0 %v895
    %v914 = vpop.f32.mrf.mxu0
    %v915 = vadd.f32 0.0, %v914
    %916 = vdwg.mxu0
    %v918 = vrot.slane %v915, 6
    %v920 = vadd.f32 %v894, %v918
    %v921 = vld [vmem:[#allocation2 + $0x8] sm:$0x30]
    %v922 = vrot.slane %v883, 6
    %923 = vrot.lane.b32.xlu0 %v922, 32
    %v924 = vpop.permute.xlu0 %923
    %v925 = vsel %vm162, %v924, 0
    %927 = vmatpush.msra.mxu0 0.0
    %928 = vmatpush.msra.mxu0 0.0
    %929 = vmatpush.msra.mxu0 0.0
    %930 = vmatpush.msra.mxu0 0.0
    %931 = vmatpush.msra.mxu0 0.0
    %932 = vmatpush.msra.mxu0 0.0
    %933 = vmatpush.msra.mxu0 0.0
    %934 = vmatpush.msra.mxu0 0.0
    %935 = vmatpush.msra.mxu0 0.0
    %936 = vmatpush.msra.mxu0 0.0
    %937 = vmatpush.msra.mxu0 0.0
    %938 = vmatpush.msra.mxu0 0.0
    %939 = vmatpush.msra.mxu0 %v160
    %940 = vmatpush.msra.mxu0 %v159
    %941 = vmatpush.msra.mxu0 %v158
    %942 = vmatpush.msra.mxu0 %v157
    %943 = vmatmul.f32.gmra.mxu0 %v925
    %v944 = vpop.f32.mrf.mxu0
    %v945 = vadd.f32 0.0, %v944
    %946 = vdwg.mxu0
    %v948 = vrot.slane %v945, 4
    %v950 = vadd.f32 %v921, %v948
    %v951 = vxor.u32 %v920, 2147483648
    %v952 = vmul.f32 %v951, 1.442695
    %v953 = vpow.pop %v952
    %v954 = vadd.f32 %v953, 1.0
    %v955 = vrcp.pop %v954
    %v956 = vmul.f32 %v954, %v955
    %v957 = vsub.f32 1.0, %v956
    %v958 = vmul.f32 %v955, %v957
    %v959 = vadd.f32 %v955, %v958
    %vm960 = vweird.f32 %v954
    %vm961 = vweird.f32 %v955
    %vm962 = vmor %vm960, %vm961
    %v963 = vsel %vm962, %v955, %v959
    %v964 = vand.u32 2147483647, %v954
    %vm965 = vcmp.eq.f32.partialorder %v964, 8.507059e+37
    %v966 = vand.u32 %v954, 2147483648
    %v967 = vor.u32 1.1754944e-38, %v966
    %v968 = vsel %vm965, %v967, %v963
    %v969 = vmul.f32 1.0, %v968
    %v970 = vtanh.pop %v920
    %v972 = vrot.slane %v837, 6
    %v974 = vmul.f32 %v969, %v972
    %976 = vrot.lane.b32.xlu0 %v970, 64
    %v977 = vpop.permute.xlu0 %976
    %v979 = vmul.f32 %v969, %v977
    %981 = vrot.lane.b32.xlu0 %v979, 32
    %v982 = vpop.permute.xlu0 %981
    %v984 = vadd.f32 %v974, %v982
    %v985 = vtanh.pop %v984
    %987 = vrot.lane.b32.xlu0 %v985, 64
    %v988 = vpop.permute.xlu0 %987
    %v990 = vmul.f32 %v969, %v988
    %v991 = vxor.u32 %v950, 2147483648
    %v992 = vmul.f32 %v991, 1.442695
    %v993 = vpow.pop %v992
    %v994 = vadd.f32 %v993, 1.0
    %v995 = vrcp.pop %v994
    %v996 = vmul.f32 %v994, %v995
    %v997 = vsub.f32 1.0, %v996
    %v998 = vmul.f32 %v995, %v997
    %v999 = vadd.f32 %v995, %v998
    %vm1000 = vweird.f32 %v994
    %vm1001 = vweird.f32 %v995
    %vm1002 = vmor %vm1000, %vm1001
    %v1003 = vsel %vm1002, %v995, %v999
    %v1004 = vand.u32 2147483647, %v994
    %vm1005 = vcmp.eq.f32.partialorder %v1004, 8.507059e+37
    %v1006 = vand.u32 %v994, 2147483648
    %v1007 = vor.u32 1.1754944e-38, %v1006
    %v1008 = vsel %vm1005, %v1007, %v1003
    %v1009 = vmul.f32 1.0, %v1008
    %v1010 = vtanh.pop %v950
    %v1012 = vrot.slane %v877, 2
    %v1014 = vmul.f32 %v1009, %v1012
    %1016 = vrot.lane.b32.xlu0 %v1010, 64
    %v1017 = vpop.permute.xlu0 %1016
    %v1019 = vmul.f32 %v1009, %v1017
    %1021 = vrot.lane.b32.xlu0 %v1019, 32
    %v1022 = vpop.permute.xlu0 %1021
    %v1024 = vadd.f32 %v1014, %v1022
    %v1025 = vtanh.pop %v1024
    %1027 = vrot.lane.b32.xlu0 %v1025, 64
    %v1028 = vpop.permute.xlu0 %1027
    %v1030 = vmul.f32 %v1009, %v1028
    %1032 = vrot.lane.b32.xlu0 %v990, 32
    %v1033 = vpop.permute.xlu0 %1032
    %1035 = vst.msk [vmem:[#allocation11 + $0x8] sm:$0xc] %vm439, %v1033
    %1037 = vrot.lane.b32.xlu0 %v1030, 64
    %v1038 = vpop.permute.xlu0 %1037
    %1040 = vst.msk [vmem:[#allocation11] sm:$0x30] %vm445, %v1038
    %v1041 = vld [vmem:[#allocation2 + $0x10] sm:$0x30]
    %v1042 = vrot.slane %v990, 2
    %1043 = vrot.lane.b32.xlu0 %v1042, 32
    %v1044 = vpop.permute.xlu0 %1043
    %v1045 = vsel %vm162, %v1044, 0
    %1047 = vmatpush.msra.mxu0 0.0
    %1048 = vmatpush.msra.mxu0 0.0
    %1049 = vmatpush.msra.mxu0 0.0
    %1050 = vmatpush.msra.mxu0 0.0
    %1051 = vmatpush.msra.mxu0 0.0
    %1052 = vmatpush.msra.mxu0 0.0
    %1053 = vmatpush.msra.mxu0 0.0
    %1054 = vmatpush.msra.mxu0 0.0
    %1055 = vmatpush.msra.mxu0 0.0
    %1056 = vmatpush.msra.mxu0 0.0
    %1057 = vmatpush.msra.mxu0 0.0
    %1058 = vmatpush.msra.mxu0 0.0
    %1059 = vmatpush.msra.mxu0 %v156
    %1060 = vmatpush.msra.mxu0 %v155
    %1061 = vmatpush.msra.mxu0 %v154
    %1062 = vmatpush.msra.mxu0 %v153
    %1063 = vmatmul.f32.gmra.mxu0 %v1045
    %v1064 = vpop.f32.mrf.mxu0
    %v1065 = vadd.f32 0.0, %v1064
    %1066 = vdwg.mxu0
    %v1068 = vrot.slane %v1065, 4
    %v1070 = vadd.f32 %v1041, %v1068
    %v1071 = vld [vmem:[#allocation2 + $0x8] sm:$0xc]
    %v1072 = vrot.slane %v1030, 4
    %1073 = vrot.lane.b32.xlu0 %v1072, 32
    %v1074 = vpop.permute.xlu0 %1073
    %v1075 = vsel %vm162, %v1074, 0
    %1077 = vmatpush.msra.mxu0 0.0
    %1078 = vmatpush.msra.mxu0 0.0
    %1079 = vmatpush.msra.mxu0 0.0
    %1080 = vmatpush.msra.mxu0 0.0
    %1081 = vmatpush.msra.mxu0 0.0
    %1082 = vmatpush.msra.mxu0 0.0
    %1083 = vmatpush.msra.mxu0 0.0
    %1084 = vmatpush.msra.mxu0 0.0
    %1085 = vmatpush.msra.mxu0 0.0
    %1086 = vmatpush.msra.mxu0 0.0
    %1087 = vmatpush.msra.mxu0 0.0
    %1088 = vmatpush.msra.mxu0 0.0
    %1089 = vmatpush.msra.mxu0 %v160
    %1090 = vmatpush.msra.mxu0 %v159
    %1091 = vmatpush.msra.mxu0 %v158
    %1092 = vmatpush.msra.mxu0 %v157
    %1093 = vmatmul.f32.gmra.mxu0 %v1075
    %v1094 = vpop.f32.mrf.mxu0
    %v1095 = vadd.f32 0.0, %v1094
    %1096 = vdwg.mxu0
    %v1098 = vrot.slane %v1095, 6
    %v1100 = vadd.f32 %v1071, %v1098
    %v1101 = vxor.u32 %v1070, 2147483648
    %v1102 = vmul.f32 %v1101, 1.442695
    %v1103 = vpow.pop %v1102
    %v1104 = vadd.f32 %v1103, 1.0
    %v1105 = vrcp.pop %v1104
    %v1106 = vmul.f32 %v1104, %v1105
    %v1107 = vsub.f32 1.0, %v1106
    %v1108 = vmul.f32 %v1105, %v1107
    %v1109 = vadd.f32 %v1105, %v1108
    %vm1110 = vweird.f32 %v1104
    %vm1111 = vweird.f32 %v1105
    %vm1112 = vmor %vm1110, %vm1111
    %v1113 = vsel %vm1112, %v1105, %v1109
    %v1114 = vand.u32 2147483647, %v1104
    %vm1115 = vcmp.eq.f32.partialorder %v1114, 8.507059e+37
    %v1116 = vand.u32 %v1104, 2147483648
    %v1117 = vor.u32 1.1754944e-38, %v1116
    %v1118 = vsel %vm1115, %v1117, %v1113
    %v1119 = vmul.f32 1.0, %v1118
    %v1120 = vtanh.pop %v1070
    %v1122 = vrot.slane %v984, 6
    %v1124 = vmul.f32 %v1119, %v1122
    %1126 = vrot.lane.b32.xlu0 %v1120, 64
    %v1127 = vpop.permute.xlu0 %1126
    %v1129 = vmul.f32 %v1119, %v1127
    %1131 = vrot.lane.b32.xlu0 %v1129, 32
    %v1132 = vpop.permute.xlu0 %1131
    %v1134 = vadd.f32 %v1124, %v1132
    %v1135 = vtanh.pop %v1134
    %1137 = vrot.lane.b32.xlu0 %v1135, 64
    %v1138 = vpop.permute.xlu0 %1137
    %v1140 = vmul.f32 %v1119, %v1138
    %v1141 = vxor.u32 %v1100, 2147483648
    %v1142 = vmul.f32 %v1141, 1.442695
    %v1143 = vpow.pop %v1142
    %v1144 = vadd.f32 %v1143, 1.0
    %v1145 = vrcp.pop %v1144
    %v1146 = vmul.f32 %v1144, %v1145
    %v1147 = vsub.f32 1.0, %v1146
    %v1148 = vmul.f32 %v1145, %v1147
    %v1149 = vadd.f32 %v1145, %v1148
    %vm1150 = vweird.f32 %v1144
    %vm1151 = vweird.f32 %v1145
    %vm1152 = vmor %vm1150, %vm1151
    %v1153 = vsel %vm1152, %v1145, %v1149
    %v1154 = vand.u32 2147483647, %v1144
    %vm1155 = vcmp.eq.f32.partialorder %v1154, 8.507059e+37
    %v1156 = vand.u32 %v1144, 2147483648
    %v1157 = vor.u32 1.1754944e-38, %v1156
    %v1158 = vsel %vm1155, %v1157, %v1153
    %v1159 = vmul.f32 1.0, %v1158
    %v1160 = vtanh.pop %v1100
    %v1162 = vrot.slane %v1024, 2
    %v1164 = vmul.f32 %v1159, %v1162
    %1166 = vrot.lane.b32.xlu0 %v1160, 64
    %v1167 = vpop.permute.xlu0 %1166
    %v1169 = vmul.f32 %v1159, %v1167
    %1171 = vrot.lane.b32.xlu0 %v1169, 32
    %v1172 = vpop.permute.xlu0 %1171
    %v1174 = vadd.f32 %v1164, %v1172
    %v1175 = vtanh.pop %v1174
    %1177 = vrot.lane.b32.xlu0 %v1175, 64
    %v1178 = vpop.permute.xlu0 %1177
    %v1180 = vmul.f32 %v1159, %v1178
    %1182 = vrot.lane.b32.xlu0 %v1140, 32
    %v1183 = vpop.permute.xlu0 %1182
    %1185 = vst.msk [vmem:[#allocation11 + $0x8] sm:$0x30] %vm591, %v1183
    %1187 = vrot.lane.b32.xlu0 %v1180, 64
    %v1188 = vpop.permute.xlu0 %1187
    %1190 = vst.msk [vmem:[#allocation11] sm:$0xc] %vm597, %v1188
    %v1191 = vld [vmem:[#allocation2 + $0x10] sm:$0xc0]
    %v1192 = vrot.slane %v1140, 4
    %1193 = vrot.lane.b32.xlu0 %v1192, 32
    %v1194 = vpop.permute.xlu0 %1193
    %v1195 = vsel %vm162, %v1194, 0
    %1197 = vmatpush.msra.mxu0 0.0
    %1198 = vmatpush.msra.mxu0 0.0
    %1199 = vmatpush.msra.mxu0 0.0
    %1200 = vmatpush.msra.mxu0 0.0
    %1201 = vmatpush.msra.mxu0 0.0
    %1202 = vmatpush.msra.mxu0 0.0
    %1203 = vmatpush.msra.mxu0 0.0
    %1204 = vmatpush.msra.mxu0 0.0
    %1205 = vmatpush.msra.mxu0 0.0
    %1206 = vmatpush.msra.mxu0 0.0
    %1207 = vmatpush.msra.mxu0 0.0
    %1208 = vmatpush.msra.mxu0 0.0
    %1209 = vmatpush.msra.mxu0 %v156
    %1210 = vmatpush.msra.mxu0 %v155
    %1211 = vmatpush.msra.mxu0 %v154
    %1212 = vmatpush.msra.mxu0 %v153
    %1213 = vmatmul.f32.gmra.mxu0 %v1195
    %v1214 = vpop.f32.mrf.mxu0
    %v1215 = vadd.f32 0.0, %v1214
    %1216 = vdwg.mxu0
    %v1218 = vrot.slane %v1215, 2
    %v1220 = vadd.f32 %v1191, %v1218
    %v1221 = vld [vmem:[#allocation2 + $0x8] sm:$0x3]
    %v1222 = vrot.slane %v1180, 2
    %1223 = vrot.lane.b32.xlu0 %v1222, 32
    %v1224 = vpop.permute.xlu0 %1223
    %v1225 = vsel %vm162, %v1224, 0
    %1227 = vmatpush.msra.mxu0 0.0
    %1228 = vmatpush.msra.mxu0 0.0
    %1229 = vmatpush.msra.mxu0 0.0
    %1230 = vmatpush.msra.mxu0 0.0
    %1231 = vmatpush.msra.mxu0 0.0
    %1232 = vmatpush.msra.mxu0 0.0
    %1233 = vmatpush.msra.mxu0 0.0
    %1234 = vmatpush.msra.mxu0 0.0
    %1235 = vmatpush.msra.mxu0 0.0
    %1236 = vmatpush.msra.mxu0 0.0
    %1237 = vmatpush.msra.mxu0 0.0
    %1238 = vmatpush.msra.mxu0 0.0
    %1239 = vmatpush.msra.mxu0 %v160
    %1240 = vmatpush.msra.mxu0 %v159
    %1241 = vmatpush.msra.mxu0 %v158
    %1242 = vmatpush.msra.mxu0 %v157
    %1243 = vmatmul.f32.gmra.mxu0 %v1225
    %v1244 = vpop.f32.mrf.mxu0
    %v1245 = vadd.f32 0.0, %v1244
    %1246 = vdwg.mxu0
    %v1247 = vadd.f32 %v1221, %v1245
    %v1248 = vxor.u32 %v1220, 2147483648
    %v1249 = vmul.f32 %v1248, 1.442695
    %v1250 = vpow.pop %v1249
    %v1251 = vadd.f32 %v1250, 1.0
    %v1252 = vrcp.pop %v1251
    %v1253 = vmul.f32 %v1251, %v1252
    %v1254 = vsub.f32 1.0, %v1253
    %v1255 = vmul.f32 %v1252, %v1254
    %v1256 = vadd.f32 %v1252, %v1255
    %vm1257 = vweird.f32 %v1251
    %vm1258 = vweird.f32 %v1252
    %vm1259 = vmor %vm1257, %vm1258
    %v1260 = vsel %vm1259, %v1252, %v1256
    %v1261 = vand.u32 2147483647, %v1251
    %vm1262 = vcmp.eq.f32.partialorder %v1261, 8.507059e+37
    %v1263 = vand.u32 %v1251, 2147483648
    %v1264 = vor.u32 1.1754944e-38, %v1263
    %v1265 = vsel %vm1262, %v1264, %v1260
    %v1266 = vmul.f32 1.0, %v1265
    %v1267 = vtanh.pop %v1220
    %v1269 = vrot.slane %v1134, 6
    %v1271 = vmul.f32 %v1266, %v1269
    %1273 = vrot.lane.b32.xlu0 %v1267, 64
    %v1274 = vpop.permute.xlu0 %1273
    %v1276 = vmul.f32 %v1266, %v1274
    %1278 = vrot.lane.b32.xlu0 %v1276, 32
    %v1279 = vpop.permute.xlu0 %1278
    %v1281 = vadd.f32 %v1271, %v1279
    %v1282 = vtanh.pop %v1281
    %1284 = vrot.lane.b32.xlu0 %v1282, 64
    %v1285 = vpop.permute.xlu0 %1284
    %v1287 = vmul.f32 %v1266, %v1285
    %v1288 = vxor.u32 %v1247, 2147483648
    %v1289 = vmul.f32 %v1288, 1.442695
    %v1290 = vpow.pop %v1289
    %v1291 = vadd.f32 %v1290, 1.0
    %v1292 = vrcp.pop %v1291
    %v1293 = vmul.f32 %v1291, %v1292
    %v1294 = vsub.f32 1.0, %v1293
    %v1295 = vmul.f32 %v1292, %v1294
    %v1296 = vadd.f32 %v1292, %v1295
    %vm1297 = vweird.f32 %v1291
    %vm1298 = vweird.f32 %v1292
    %vm1299 = vmor %vm1297, %vm1298
    %v1300 = vsel %vm1299, %v1292, %v1296
    %v1301 = vand.u32 2147483647, %v1291
    %vm1302 = vcmp.eq.f32.partialorder %v1301, 8.507059e+37
    %v1303 = vand.u32 %v1291, 2147483648
    %v1304 = vor.u32 1.1754944e-38, %v1303
    %v1305 = vsel %vm1302, %v1304, %v1300
    %v1306 = vmul.f32 1.0, %v1305
    %v1307 = vtanh.pop %v1247
    %v1309 = vrot.slane %v1174, 2
    %v1311 = vmul.f32 %v1306, %v1309
    %1313 = vrot.lane.b32.xlu0 %v1307, 64
    %v1314 = vpop.permute.xlu0 %1313
    %v1316 = vmul.f32 %v1306, %v1314
    %1318 = vrot.lane.b32.xlu0 %v1316, 32
    %v1319 = vpop.permute.xlu0 %1318
    %v1321 = vadd.f32 %v1311, %v1319
    %v1322 = vtanh.pop %v1321
    %1324 = vrot.lane.b32.xlu0 %v1322, 64
    %v1325 = vpop.permute.xlu0 %1324
    %v1327 = vmul.f32 %v1306, %v1325
    %1329 = vrot.lane.b32.xlu0 %v1287, 32
    %v1330 = vpop.permute.xlu0 %1329
    %1332 = vst.msk [vmem:[#allocation11 + $0x8] sm:$0xc0] %vm740, %v1330
    %1334 = vrot.lane.b32.xlu0 %v1327, 64
    %v1335 = vpop.permute.xlu0 %1334
    %1337 = vst.msk [vmem:[#allocation11] sm:$0x3] %vm746, %v1335
    // Predicated region
    $region38: #{tpu_custom_call.1} parent=1 // pred_check
      _
    $region39: #{tpu_custom_call.1} parent=1 // pred_check_branch
      %1339 = sbr.rel (0) target = $region41
    $region40: #{tpu_custom_call.1} parent=1 // pred_region
      %1341 = vsyncadd [#allocation5], 0
      %s1342 = sshll.u32 [#allocation11], 4
      %s1343 = int_to_ptr.vmem [resolvable:$true] %s1342
      %s1344 = sshll.u32 %s5, 4
      %s1345 = int_to_ptr.hbm [resolvable:$true] %s1344
      %1350 = dma.vmem_to_hbm [thread:$0]  %s1343, 256, %s1345, [#allocation5], 128, 128, 8
    $region41: #{tpu_custom_call.1} parent=1 // pred_fallthru
      _
    // Predicated region
    $region42: #{tpu_custom_call.1} parent=1 // pred_check
      _
    $region43: #{tpu_custom_call.1} parent=1 // pred_check_branch
      %1352 = sbr.rel (0) target = $region45
    $region44: #{tpu_custom_call.1} parent=1 // pred_region
      %1354 = dma.done [#allocation5], 256
    $region45: #{tpu_custom_call.1} parent=1 // pred_fallthru
      _
    %1355 = vsyncpa [#allocation4], 1
    %1356 = vsyncpa [#allocation7], 1
    %1357 = vsyncpa [#allocation10], 1
    %1358 = vsyncpa [#allocation5], 1

</llo_original>
